<compile_context>
chip_gen: v5e
topology: v5e:2x2
jax: 0.10.0
libtpu: 0.0.40
codegen_flags: <defaults>
</compile_context>

<pallas_src>
import numpy as np
import jax
import jax.numpy as jnp
from jax.experimental import pallas as pl
from jax.experimental.pallas import tpu as pltpu


# --------------------------------------------------------------------------- #
# Pallas kernel: separable Gaussian conv, TB batch elements per grid step     #
# --------------------------------------------------------------------------- #
def _lpf_kernel(x_ref, cyz_ref, cxt_ref, out_ref):
    """x_ref:(TB,X,Y*Z)  cyz_ref:(Y*Z,Yo*Zo)  cxt_ref:(Xo,X)  out_ref:(TB,Xo,Yo*Zo)."""
    TB, X, YZ = x_ref.shape
    Xo = cxt_ref.shape[0]
    YoZo = cyz_ref.shape[1]

    # conv over (y, z): one big MXU matmul, M = TB*X rows, deep contraction Y*Z,
    # lane axis Yo*Zo (multiple of 128 -> unmasked lane-dense stores).
    xb = x_ref[...].astype(cyz_ref.dtype).reshape(TB * X, YZ)          # bf16 operands
    t = jnp.dot(xb, cyz_ref[...], preferred_element_type=jnp.float32)  # f32 accumulate

    # keep the intermediate in bf16: halves vreg/VMEM pressure and MXU input bw
    t = t.reshape(TB, X, YoZo).astype(cxt_ref.dtype)

    # conv over x: one batched matmul over TB (broadcast of the tiny (Xo, X) matrix)
    cxt_b = jnp.broadcast_to(cxt_ref[...], (TB, Xo, X))
    out = jnp.einsum("box,bxn->bon", cxt_b, t, preferred_element_type=jnp.float32)

    out_ref[...] = out.astype(out_ref.dtype)


# --------------------------------------------------------------------------- #
# Host-side construction (mirrors LowPassFilter.__init__, pure precompute)    #
# --------------------------------------------------------------------------- #
def _lowpass_1d_kernels(scale, stride, transposed, steps):
    """1-D Gaussian factors with the global 1/sum normalization folded in."""
    sigma = 0.5 * (scale ** 2 - 1) ** 0.5
    size = int(1 + 2 * 2.5 * sigma)
    if size % 2 == 0:
        size += 1
    r = np.linspace(-1.0, 1.0, size)
    mn = min(steps)
    g = []
    for s in steps:
        v = r * s / mn
        v = v[np.abs(v) <= 1.0]
        g.append(np.exp(-((size // 2) * v) ** 2 / (2.0 * sigma ** 2)))
    total = g[0].sum() * g[1].sum() * g[2].sum()   # == full 3-D kernel sum (outer product)
    norm = 1.0 / total
    if transposed:
        norm *= float(stride) ** 3
    nf = norm ** (1.0 / 3.0)                       # distribute evenly over the 3 factors
    g = [gi * nf for gi in g]
    return size, g


def _conv_matrix(n_in, k1d, pad, stride):
    """Dense 1-D cross-correlation matrix C (n_in, n_out): out = x @ C.

    Zero padding and stride are encoded directly (rows outside [0, n_in) are
    simply absent), so no padded volume is ever materialized.
    """
    k = int(k1d.shape[0])
    n_out = (n_in + 2 * pad - k) // stride + 1
    c = np.zeros((n_in, n_out), dtype=np.float64)
    for o in range(n_out):
        start = o * stride - pad
        for t in range(k):
            i = start + t
            if 0 <= i < n_in:
                c[i, o] = k1d[t]
    return c


# Cache of host-built + device-uploaded conv matrices (feedback: don't rebuild
# np.kron and re-upload every forward call).
_WEIGHT_CACHE = {}


def _get_conv_weights(shape_xyz, scale, stride, transposed, steps, mxu_dtype):
    key = (tuple(int(s) for s in shape_xyz), float(scale), int(stride),
           bool(transposed), tuple(int(s) for s in steps), np.dtype(mxu_dtype).name)
    cached = _WEIGHT_CACHE.get(key)
    if cached is not None:
        return cached

    X, Y, Z = shape_xyz
    size, (kx, ky, kz) = _lowpass_1d_kernels(scale, stride, transposed, steps)
    pad = size // 2
    cx = _conv_matrix(X, kx, pad, stride)          # (X,  Xo)
    cy = _conv_matrix(Y, ky, pad, stride)          # (Y,  Yo)
    cz = _conv_matrix(Z, kz, pad, stride)          # (Z,  Zo)
    Xo, Yo, Zo = cx.shape[1], cy.shape[1], cz.shape[1]

    cyz = jnp.asarray(np.kron(cy, cz), dtype=mxu_dtype)   # (Y*Z, Yo*Zo)
    cxt = jnp.asarray(cx.T, dtype=mxu_dtype)               # (Xo, X)

    result = (Xo, Yo, Zo, cyz, cxt)
    _WEIGHT_CACHE[key] = result
    return result


def _choose_tb(B, X, target_rows=256):
    """Pick TB | B so TB*X <= target_rows while keeping >= 2 grid steps (v7x: 2 TCs)."""
    if B <= 1:
        return 1
    best = 1
    for tb in range(1, B + 1):
        if B % tb:
            continue
        if B // tb < 2:            # keep at least 2 grid steps for megacore sharding
            continue
        if tb * X <= target_rows:
            best = tb
    return best


# --------------------------------------------------------------------------- #
# Forward wrapper (mirrors LowPassFilter.forward)                             #
# --------------------------------------------------------------------------- #
def low_pass_filter_forward(image, scale, stride=1, transposed=False, steps=(1, 1, 1)):
    """image: (..., x, y, z) -> (..., x', y', z')."""
    if scale <= 1:
        assert stride == 1
        return image
    if transposed:
        # TODO(synk): conv_transpose3d path not implemented in the Pallas kernel.
        raise NotImplementedError("transposed LowPassFilter is not supported")

    lead = image.shape[:-3]
    X, Y, Z = image.shape[-3:]
    B = int(np.prod(lead)) if lead else 1

    # bf16 MXU operands (f32 accumulation in-kernel) regardless of input dtype.
    mxu_dtype = jnp.bfloat16
    Xo, Yo, Zo, cyz, cxt = _get_conv_weights((X, Y, Z), scale, stride, transposed,
                                             steps, mxu_dtype)
    YZ, YoZo = Y * Z, Yo * Zo

    x3d = image.reshape((B, X, YZ))                 # contiguous reshape: free
    TB = _choose_tb(B, X)
    n_steps = B // TB

    itemsize = jnp.dtype(image.dtype).itemsize
    cost = pl.CostEstimate(
        flops=2 * B * X * YZ * YoZo + 2 * B * Xo * X * YoZo,
        transcendentals=0,
        bytes_accessed=(B * X * YZ * itemsize + B * Xo * YoZo * itemsize
                        + (YZ * YoZo + Xo * X) * 2),
    )

    def build(use_single_buffered_weights):
        def const_spec(shape):
            idx = lambda b: (0,) * len(shape)
            if use_single_buffered_weights:
                # constant index_map -> double-buffering is pure VMEM waste
                return pl.BlockSpec(shape, idx, pipeline_mode=pl.Buffered(1))
            return pl.BlockSpec(shape, idx)

        return pl.pallas_call(
            _lpf_kernel,
            out_shape=jax.ShapeDtypeStruct((B, Xo, YoZo), image.dtype),
            grid=(n_steps,),
            in_specs=[
                pl.BlockSpec((TB, X, YZ), lambda b: (b, 0, 0)),
                const_spec((YZ, YoZo)),
                const_spec((Xo, X)),
            ],
            out_specs=pl.BlockSpec((TB, Xo, YoZo), lambda b: (b, 0, 0)),
            compiler_params=pltpu.CompilerParams(dimension_semantics=("parallel",)),
            cost_estimate=cost,
        )

    try:
        out2d = build(True)(x3d, cyz, cxt)
    except Exception:
        # Fallback if pipeline_mode=pl.Buffered(1) is unsupported in this jax build.
        out2d = build(False)(x3d, cyz, cxt)

    return out2d.reshape(lead + (Xo, Yo, Zo))       # contiguous reshape: free


# --------------------------------------------------------------------------- #
# Pure-JAX reference (exactly mirrors the PyTorch math) — sanity check only   #
# --------------------------------------------------------------------------- #
def _reference_forward(image, scale, stride=1, steps=(1, 1, 1)):
    sigma = 0.5 * (scale ** 2 - 1) ** 0.5
    size = int(1 + 2 * 2.5 * sigma)
    if size % 2 == 0:
        size += 1
    r = np.linspace(-1.0, 1.0, size)
    mn = min(steps)
    ax = []
    for s in steps:
        v = r * s / mn
        ax.append(v[np.abs(v) <= 1.0])
    gx, gy, gz = np.meshgrid(ax[0], ax[1], ax[2], indexing="ij")
    lattice = np.stack([gx, gy, gz], axis=-1) * (size // 2)
    kernel = np.exp(-np.sum(lattice ** 2, axis=-1) / (2.0 * sigma ** 2))
    kernel = kernel / kernel.sum()
    w = jnp.asarray(kernel, jnp.float32)[None, None]          # (1,1,Kx,Ky,Kz)

    lead = image.shape[:-3]
    x = image.reshape((-1, 1) + image.shape[-3:])
    out = jax.lax.conv_general_dilated(
        x, w, window_strides=(stride,) * 3,
        padding=[(size // 2, size // 2)] * 3,
        dimension_numbers=("NCDHW", "OIDHW", "NCDHW"),
        precision=jax.lax.Precision.HIGHEST)
    return out.reshape(lead + out.shape[-3:])


if __name__ == "__main__":
    key = jax.random.PRNGKey(0)

    # small shapes: batch=2, channels=4 (extra leading dims), spatial 16^3
    B, C, N = 2, 4, 16
    SCALE = 2.0                                    # -> sigma~0.866, size=5, pad=2
    image = jax.random.normal(key, (B, C, N, N, N), jnp.float32)

    out = low_pass_filter_forward(image, SCALE)
    out = jax.block_until_ready(out)
    assert out.shape == (B, C, N, N, N), out.shape

    ref = _reference_forward(image, SCALE)
    max_err = float(jnp.max(jnp.abs(out - ref)))
    mean_err = float(jnp.mean(jnp.abs(out - ref)))
    if not np.isfinite(max_err) or max_err > 5e-2 or mean_err > 5e-3:
        raise AssertionError(
            f"mismatch vs reference: max abs err = {max_err}, mean abs err = {mean_err}")

    # second call exercises the host-side weight cache (no np.kron / re-upload)
    out2 = jax.block_until_ready(low_pass_filter_forward(image, SCALE))
    assert out2.shape == out.shape

    # scale <= 1 identity path
    ident = low_pass_filter_forward(image, 1.0)
    assert ident.shape == image.shape

    print("KERNEL_OK")
</pallas_src>

<mosaic_0001>
module attributes {stable_mosaic.version = 11 : i64} {
  func.func @_lpf_kernel(%arg0: i32, %arg1: memref<4x16x256xf32, #tpu.memory_space<vmem>>, %arg2: memref<256x256xbf16, #tpu.memory_space<vmem>>, %arg3: memref<16x16xbf16, #tpu.memory_space<vmem>>, %arg4: memref<4x16x256xf32, #tpu.memory_space<vmem>>) attributes {dimension_semantics = [#tpu.dimension_semantics<parallel>], iteration_bounds = array<i64: 2>, scalar_prefetch = 0 : i64, scratch_operands = 0 : i64, tpu.core_type = #tpu.core_type<tc>, window_params = [{transform_indices = @transform_0, window_bounds = array<i64: 4, 16, 256>}, {pipeline_mode = #tpu.pipeline_mode<synchronous>, transform_indices = @transform_1, window_bounds = array<i64: 256, 256>}, {pipeline_mode = #tpu.pipeline_mode<synchronous>, transform_indices = @transform_2, window_bounds = array<i64: 16, 16>}, {transform_indices = @transform_3, window_bounds = array<i64: 4, 16, 256>}]} {
    %c0 = arith.constant 0 : index
    %c0_0 = arith.constant 0 : index
    %c0_1 = arith.constant 0 : index
    %0 = vector.load %arg1[%c0, %c0_0, %c0_1] : memref<4x16x256xf32, #tpu.memory_space<vmem>>, vector<4x16x256xf32>
    %1 = arith.truncf %0 : vector<4x16x256xf32> to vector<4x16x256xbf16>
    %2 = vector.shape_cast %1 : vector<4x16x256xbf16> to vector<64x256xbf16>
    %c0_2 = arith.constant 0 : index
    %c0_3 = arith.constant 0 : index
    %3 = vector.load %arg2[%c0_2, %c0_3] : memref<256x256xbf16, #tpu.memory_space<vmem>>, vector<256x256xbf16>
    %cst = arith.constant dense<0.000000e+00> : vector<64x256xf32>
    %4 = tpu.matmul %2, %3, %cst {dimension_numbers = #tpu.dot_dimension_numbers<[1], [0], [0], [1], [0, 0, 1, 1], [], []>} : vector<64x256xbf16>, vector<256x256xbf16>, vector<64x256xf32> -> vector<64x256xf32>
    %5 = vector.shape_cast %4 : vector<64x256xf32> to vector<4x16x256xf32>
    %6 = arith.truncf %5 : vector<4x16x256xf32> to vector<4x16x256xbf16>
    %c0_4 = arith.constant 0 : index
    %c0_5 = arith.constant 0 : index
    %7 = vector.load %arg3[%c0_4, %c0_5] : memref<16x16xbf16, #tpu.memory_space<vmem>>, vector<16x16xbf16>
    %8 = vector.shape_cast %7 : vector<16x16xbf16> to vector<1x16x16xbf16>
    %9 = vector.broadcast %8 : vector<1x16x16xbf16> to vector<4x16x16xbf16>
    "tpu.trace_start"() <{level = 10 : i32, message = "box,bxn->bon"}> : () -> ()
    %cst_6 = arith.constant dense<0.000000e+00> : vector<4x16x256xf32>
    %10 = tpu.matmul %9, %6, %cst_6 {dimension_numbers = #tpu.dot_dimension_numbers<[2], [1], [1], [2], [0, 0, 0, 1, 1, 2], [0], [0]>} : vector<4x16x16xbf16>, vector<4x16x256xbf16>, vector<4x16x256xf32> -> vector<4x16x256xf32>
    "tpu.trace_stop"() : () -> ()
    %c0_7 = arith.constant 0 : index
    %c0_8 = arith.constant 0 : index
    %c0_9 = arith.constant 0 : index
    %11 = vector.load %arg4[%c0_7, %c0_8, %c0_9] : memref<4x16x256xf32, #tpu.memory_space<vmem>>, vector<4x16x256xf32>
    tpu.vector_store %arg4[%c0_7, %c0_8, %c0_9], %10 {strides = array<i32>} : memref<4x16x256xf32, #tpu.memory_space<vmem>>, vector<4x16x256xf32>,
    return
  }
  func.func @transform_0(%arg0: i32) -> (i32, i32, i32) {
    %c0_i32 = arith.constant 0 : i32
    %c0_i32_0 = arith.constant 0 : i32
    %c0_i32_1 = arith.constant 0 : i32
    return %arg0, %c0_i32, %c0_i32_0 : i32, i32, i32
  }
  func.func @transform_1(%arg0: i32) -> (i32, i32) {
    %c0_i32 = arith.constant 0 : i32
    %c0_i32_0 = arith.constant 0 : i32
    %c0_i32_1 = arith.constant 0 : i32
    return %c0_i32, %c0_i32_0 : i32, i32
  }
  func.func @transform_2(%arg0: i32) -> (i32, i32) {
    %c0_i32 = arith.constant 0 : i32
    %c0_i32_0 = arith.constant 0 : i32
    %c0_i32_1 = arith.constant 0 : i32
    return %c0_i32, %c0_i32_0 : i32, i32
  }
  func.func @transform_3(%arg0: i32) -> (i32, i32, i32) {
    %c0_i32 = arith.constant 0 : i32
    %c0_i32_0 = arith.constant 0 : i32
    %c0_i32_1 = arith.constant 0 : i32
    return %arg0, %c0_i32, %c0_i32_0 : i32, i32, i32
  }
}

module attributes {stable_mosaic.version = 11 : i64} {
  func.func @_lpf_kernel(%arg0: i32, %arg1: memref<4x16x256xf32, #tpu.memory_space<vmem>>, %arg2: memref<256x256xbf16, #tpu.memory_space<vmem>>, %arg3: memref<16x16xbf16, #tpu.memory_space<vmem>>, %arg4: memref<4x16x256xf32, #tpu.memory_space<vmem>>) attributes {dimension_semantics = [#tpu.dimension_semantics<parallel>], iteration_bounds = array<i64: 2>, scalar_prefetch = 0 : i64, scratch_operands = 0 : i64, tpu.core_type = #tpu.core_type<tc>, window_params = [{transform_indices = @transform_0, window_bounds = array<i64: 4, 16, 256>}, {pipeline_mode = #tpu.pipeline_mode<synchronous>, transform_indices = @transform_1, window_bounds = array<i64: 256, 256>}, {pipeline_mode = #tpu.pipeline_mode<synchronous>, transform_indices = @transform_2, window_bounds = array<i64: 16, 16>}, {transform_indices = @transform_3, window_bounds = array<i64: 4, 16, 256>}]} {
    %c0 = arith.constant 0 : index
    %c0_0 = arith.constant 0 : index
    %c0_1 = arith.constant 0 : index
    %0 = vector.load %arg1[%c0, %c0_0, %c0_1] : memref<4x16x256xf32, #tpu.memory_space<vmem>>, vector<4x16x256xf32>
    %1 = arith.truncf %0 : vector<4x16x256xf32> to vector<4x16x256xbf16>
    %2 = vector.shape_cast %1 : vector<4x16x256xbf16> to vector<64x256xbf16>
    %c0_2 = arith.constant 0 : index
    %c0_3 = arith.constant 0 : index
    %3 = vector.load %arg2[%c0_2, %c0_3] : memref<256x256xbf16, #tpu.memory_space<vmem>>, vector<256x256xbf16>
    %cst = arith.constant dense<0.000000e+00> : vector<64x256xf32>
    %4 = tpu.matmul %2, %3, %cst {dimension_numbers = #tpu.dot_dimension_numbers<[1], [0], [0], [1], [0, 0, 1, 1], [], []>} : vector<64x256xbf16>, vector<256x256xbf16>, vector<64x256xf32> -> vector<64x256xf32>
    %5 = vector.shape_cast %4 : vector<64x256xf32> to vector<4x16x256xf32>
    %6 = arith.truncf %5 : vector<4x16x256xf32> to vector<4x16x256xbf16>
    %c0_4 = arith.constant 0 : index
    %c0_5 = arith.constant 0 : index
    %7 = vector.load %arg3[%c0_4, %c0_5] : memref<16x16xbf16, #tpu.memory_space<vmem>>, vector<16x16xbf16>
    %8 = vector.shape_cast %7 : vector<16x16xbf16> to vector<1x16x16xbf16>
    %9 = vector.broadcast %8 : vector<1x16x16xbf16> to vector<4x16x16xbf16>
    "tpu.trace_start"() <{level = 10 : i32, message = "box,bxn->bon"}> : () -> ()
    %cst_6 = arith.constant dense<0.000000e+00> : vector<4x16x256xf32>
    %10 = tpu.matmul %9, %6, %cst_6 {dimension_numbers = #tpu.dot_dimension_numbers<[2], [1], [1], [2], [0, 0, 0, 1, 1, 2], [0], [0]>} : vector<4x16x16xbf16>, vector<4x16x256xbf16>, vector<4x16x256xf32> -> vector<4x16x256xf32>
    "tpu.trace_stop"() : () -> ()
    %c0_7 = arith.constant 0 : index
    %c0_8 = arith.constant 0 : index
    %c0_9 = arith.constant 0 : index
    %11 = vector.load %arg4[%c0_7, %c0_8, %c0_9] : memref<4x16x256xf32, #tpu.memory_space<vmem>>, vector<4x16x256xf32>
    tpu.vector_store %arg4[%c0_7, %c0_8, %c0_9], %10 {strides = array<i32>} : memref<4x16x256xf32, #tpu.memory_space<vmem>>, vector<4x16x256xf32>,
    return
  }
  func.func @transform_0(%arg0: i32) -> (i32, i32, i32) {
    %c0_i32 = arith.constant 0 : i32
    %c0_i32_0 = arith.constant 0 : i32
    %c0_i32_1 = arith.constant 0 : i32
    return %arg0, %c0_i32, %c0_i32_0 : i32, i32, i32
  }
  func.func @transform_1(%arg0: i32) -> (i32, i32) {
    %c0_i32 = arith.constant 0 : i32
    %c0_i32_0 = arith.constant 0 : i32
    %c0_i32_1 = arith.constant 0 : i32
    return %c0_i32, %c0_i32_0 : i32, i32
  }
  func.func @transform_2(%arg0: i32) -> (i32, i32) {
    %c0_i32 = arith.constant 0 : i32
    %c0_i32_0 = arith.constant 0 : i32
    %c0_i32_1 = arith.constant 0 : i32
    return %c0_i32, %c0_i32_0 : i32, i32
  }
  func.func @transform_3(%arg0: i32) -> (i32, i32, i32) {
    %c0_i32 = arith.constant 0 : i32
    %c0_i32_0 = arith.constant 0 : i32
    %c0_i32_1 = arith.constant 0 : i32
    return %arg0, %c0_i32, %c0_i32_0 : i32, i32, i32
  }
}

</mosaic_0001>

<llo_original>
// kernel: tpu_custom_call.1
$region0: #{tpu_custom_call.1}
  #allocation0 [shape = 'u32[]', space=smem, size = 0x4, offset = 0x4, fixed_abs, tag = 'smem constant byte address 0x4 - core index']
  #allocation1 [shape = 'u32[72,128]{1,0:T(1,128)}', space=vmem, size = 0x9000, scoped, tag = 'internal scratch']
  %s0 = inlined_call_operand.hbm [shape: f32[8,16,256], index: 0, kind: input, shape index: {}]
  %s1 = inlined_call_operand.hbm [shape: bf16[256,256], index: 1, kind: input, shape index: {}]
  %s2 = inlined_call_operand.hbm [shape: bf16[16,16], index: 2, kind: input, shape index: {}]
  %s3 = inlined_call_operand.hbm [shape: f32[8,16,256], index: 3, kind: output, shape index: {}]
  %s4 = sld [smem:[#allocation0]]
  $region57: #{tpu_custom_call.1} parent=0
    _
  %s6 = ssub.s32 1, %s4
  %s7 = scalar_select 0, %s6, %s4
  $region1: #{tpu_custom_call.1} parent=0
    #allocation2 [shape = 'u8[131072]{0}', space=vmem, size = 0x20000, scoped, tag = 'input window, operand 0']
    #allocation3 [shape = 's32[2]{0}', space=sflag, size = 0x8, scoped, tag = 'scoped memory for tpu_custom_call.1']
    #allocation4 [shape = 's32[2]{0}', space=sflag, size = 0x8, scoped, tag = 'scoped memory for tpu_custom_call.1']
    #allocation5 [shape = 'u8[131072]{0}', space=vmem, size = 0x20000, scoped, tag = 'input window, operand 1, single buffered']
    #allocation6 [shape = 's32[1]{0}', space=sflag, size = 0x4, scoped, tag = 'scoped memory for tpu_custom_call.1']
    #allocation7 [shape = 'u8[4096]{0}', space=vmem, size = 0x1000, scoped, tag = 'input window, operand 2, single buffered']
    #allocation8 [shape = 'u8[131072]{0}', space=vmem, size = 0x20000, scoped, tag = 'output window, operand 0']
    %8 = vsyncpa [#allocation3], 0
    %s9 = scalar_lea.sflag [#allocation3], 1
    %10 = vsyncpa %s9, 0
    %11 = vsyncpa [#allocation6], 0
    %12 = vsyncpa [#allocation4], 0
    %s13 = scalar_lea.sflag [#allocation4], 1
    %14 = vsyncpa %s13, 0
    loop: start=0, step=1, limit=4
    $region2: #{tpu_custom_call.1} parent=1 // loop_pre_header
      _
    $region3: #{tpu_custom_call.1} parent=1 // loop_header
      %s16 = sphi 0, %s20
      %p17 = scmp.ge.s32.totalorder %s16, 4
      %s26 = sphi 0, %s28
      %s29 = sphi 0, %s26
      %s30 = sphi 0, %s29
      %s46 = sphi 0, %s30
      %s50 = sphi 0, %s50
      %s52 = sphi 0, %s50
      %s53 = sphi 0, %s52
      %s67 = sphi 0, %s53
      %s71 = sphi 0, %s71
      %s73 = sphi 0, %s71
      %s74 = sphi 0, %s73
      %s88 = sphi 0, %s74
      %s94 = sphi 0, %s96
      %s97 = sphi 0, %s94
      %s98 = sphi 0, %s97
      %s114 = sphi 0, %s98
    $region4: #{tpu_custom_call.1} parent=1 // loop_header_branch
      %19 = sbr.rel (%p17) target = $region8
    $region5: #{tpu_custom_call.1} parent=1 // loop_body
      %s21 = ssub.s32 %s16, 1
      %s22 = ssub.s32 %s16, 2
      %s23 = sadd.s32 %s16, 1
      %s24 = ssub.s32 %s16, %s23
      %p25 = scmp.eq.s32.totalorder %s24, 0
      %s27 = sadd.s32 %s26, 1
      %s28 = scalar_select %p25, %s26, %s27
      %p31 = pneg %p25
      %p32 = scmp.eq.s32.totalorder %s16, 1
      %p33 = por %p31, %p32
      %p34 = scmp.ne.s32.totalorder %s26, %s29
      %p35 = scmp.eq.s32.totalorder %s16, 0
      %p36 = por %p34, %p35
      %p37 = scmp.ne.s32.totalorder %s26, %s29
      %p38 = scmp.eq.s32.totalorder %s21, 1
      %p39 = por %p37, %p38
      %p40 = scmp.ne.s32.totalorder %s29, %s30
      %p41 = scmp.eq.s32.totalorder %s21, 0
      %p42 = por %p40, %p41
      %p43 = scmp.ne.s32.totalorder %s29, %s30
      %p44 = scmp.eq.s32.totalorder %s22, 1
      %p45 = por %p43, %p44
      %p47 = scmp.ne.s32.totalorder %s30, %s46
      %p48 = scmp.eq.s32.totalorder %s22, 0
      %p49 = por %p47, %p48
      %s51 = sadd.s32 %s50, 1
      %p54 = scmp.eq.s32.totalorder %s16, 1
      %p55 = scmp.ne.s32.totalorder %s50, %s52
      %p56 = scmp.eq.s32.totalorder %s16, 0
      %p57 = por %p55, %p56
      %p58 = scmp.ne.s32.totalorder %s50, %s52
      %p59 = scmp.eq.s32.totalorder %s21, 1
      %p60 = por %p58, %p59
      %p61 = scmp.ne.s32.totalorder %s52, %s53
      %p62 = scmp.eq.s32.totalorder %s21, 0
      %p63 = por %p61, %p62
      %p64 = scmp.ne.s32.totalorder %s52, %s53
      %p65 = scmp.eq.s32.totalorder %s22, 1
      %p66 = por %p64, %p65
      %p68 = scmp.ne.s32.totalorder %s53, %s67
      %p69 = scmp.eq.s32.totalorder %s22, 0
      %p70 = por %p68, %p69
      %s72 = sadd.s32 %s71, 1
      %p75 = scmp.eq.s32.totalorder %s16, 1
      %p76 = scmp.ne.s32.totalorder %s71, %s73
      %p77 = scmp.eq.s32.totalorder %s16, 0
      %p78 = por %p76, %p77
      %p79 = scmp.ne.s32.totalorder %s71, %s73
      %p80 = scmp.eq.s32.totalorder %s21, 1
      %p81 = por %p79, %p80
      %p82 = scmp.ne.s32.totalorder %s73, %s74
      %p83 = scmp.eq.s32.totalorder %s21, 0
      %p84 = por %p82, %p83
      %p85 = scmp.ne.s32.totalorder %s73, %s74
      %p86 = scmp.eq.s32.totalorder %s22, 1
      %p87 = por %p85, %p86
      %p89 = scmp.ne.s32.totalorder %s74, %s88
      %p90 = scmp.eq.s32.totalorder %s22, 0
      %p91 = por %p89, %p90
      %s92 = ssub.s32 %s16, %s23
      %p93 = scmp.eq.s32.totalorder %s92, 0
      %s95 = sadd.s32 %s94, 1
      %s96 = scalar_select %p93, %s94, %s95
      %p99 = pneg %p93
      %p100 = scmp.eq.s32.totalorder %s16, 1
      %p101 = por %p99, %p100
      %p102 = scmp.ne.s32.totalorder %s94, %s97
      %p103 = scmp.eq.s32.totalorder %s16, 0
      %p104 = por %p102, %p103
      %p105 = scmp.ne.s32.totalorder %s94, %s97
      %p106 = scmp.eq.s32.totalorder %s21, 1
      %p107 = por %p105, %p106
      %p108 = scmp.ne.s32.totalorder %s97, %s98
      %p109 = scmp.eq.s32.totalorder %s21, 0
      %p110 = por %p108, %p109
      %p111 = scmp.ne.s32.totalorder %s97, %s98
      %p112 = scmp.eq.s32.totalorder %s22, 1
      %p113 = por %p111, %p112
      %p115 = scmp.ne.s32.totalorder %s98, %s114
      %p116 = scmp.eq.s32.totalorder %s22, 0
      %p117 = por %p115, %p116
      %p118 = scmp.le.s32.totalorder 1, %s16
      %p119 = scmp.lt.s32.totalorder %s16, 3
      %p120 = pnand %p118, %p119
      %p121 = pneg %p120
      // Predicated region
      $region9: #{tpu_custom_call.1} parent=5 // pred_check
        _
      $region10: #{tpu_custom_call.1} parent=5 // pred_check_branch
        %123 = sbr.rel (%p120) target = $region12
      $region11: #{tpu_custom_call.1} parent=5 // pred_region
        %s124 = ssub.s32 %s16, 1
        // Predicated region
        $region13: #{tpu_custom_call.1} parent=11 // pred_check
          %p125 = pneg %p63
        $region14: #{tpu_custom_call.1} parent=11 // pred_check_branch
          %127 = sbr.rel (%p125) target = $region16
        $region15: #{tpu_custom_call.1} parent=11 // pred_region
          %129 = vsyncadd [#allocation6], 0
          %s130 = sshll.u32 %s1, 4
          %s131 = int_to_ptr.hbm [resolvable:$true] %s130
          %s132 = sshll.u32 [#allocation5], 4
          %s133 = int_to_ptr.vmem [resolvable:$true] %s132
          %138 = dma.hbm_to_vmem [thread:$0]  %s131, 4096, %s133, [#allocation6], 128, 128, 8
        $region16: #{tpu_custom_call.1} parent=11 // pred_fallthru
          _
        // Predicated region
        $region17: #{tpu_custom_call.1} parent=11 // pred_check
          %p139 = pneg %p84
        $region18: #{tpu_custom_call.1} parent=11 // pred_check_branch
          %141 = sbr.rel (%p139) target = $region20
        $region19: #{tpu_custom_call.1} parent=11 // pred_region
          %143 = vsyncadd [#allocation6], 0
          %s144 = sshll.u32 %s2, 4
          %s145 = int_to_ptr.hbm [resolvable:$true] %s144
          %s146 = sshll.u32 [#allocation7], 4
          %s147 = int_to_ptr.vmem [resolvable:$true] %s146
          %152 = dma.hbm_to_vmem [thread:$0]  %s145, 128, %s147, [#allocation6], 64, 64, 4
        $region20: #{tpu_custom_call.1} parent=11 // pred_fallthru
          _
      $region12: #{tpu_custom_call.1} parent=5 // pred_fallthru
        _
      %p153 = scmp.lt.s32.totalorder %s16, 2
      // Predicated region
      $region21: #{tpu_custom_call.1} parent=5 // pred_check
        %p154 = pneg %p153
      $region22: #{tpu_custom_call.1} parent=5 // pred_check_branch
        %156 = sbr.rel (%p154) target = $region24
      $region23: #{tpu_custom_call.1} parent=5 // pred_region
        // Predicated region
        $region25: #{tpu_custom_call.1} parent=23 // pred_check
          %p157 = pneg %p36
        $region26: #{tpu_custom_call.1} parent=23 // pred_check_branch
          %159 = sbr.rel (%p157) target = $region28
        $region27: #{tpu_custom_call.1} parent=23 // pred_region
          %s160 = sand.u32 %s26, 1
          %s161 = scalar_lea.sflag [#allocation3], %s160
          %s162 = sand.u32 %s26, 1
          %s163 = smul.addr %s162, 128
          %s164 = scalar_lea.vmem [#allocation2], %s163
          %s165 = smul.u32 4, %s16
          %167 = vsyncadd %s161, 0
          %s168 = smul.addr %s165, 4
          %s169 = smul.addr %s168, 8
          %s170 = scalar_lea.hbm %s0, %s169
          %s171 = sshll.u32 %s170, 4
          %s172 = int_to_ptr.hbm [resolvable:$true] %s171
          %s173 = sshll.u32 %s164, 4
          %s174 = int_to_ptr.vmem [resolvable:$true] %s173
          %179 = dma.hbm_to_vmem [thread:$0]  %s172, 2048, %s174, %s161, 256, 256, 16
        $region28: #{tpu_custom_call.1} parent=23 // pred_fallthru
          _
      $region24: #{tpu_custom_call.1} parent=5 // pred_fallthru
        _
      %p180 = scmp.le.s32.totalorder 1, %s16
      %p181 = scmp.lt.s32.totalorder %s16, 3
      %p182 = pnand %p180, %p181
      %p183 = pneg %p182
      // Predicated region
      $region29: #{tpu_custom_call.1} parent=5 // pred_check
        _
      $region30: #{tpu_custom_call.1} parent=5 // pred_check_branch
        %185 = sbr.rel (%p182) target = $region32
      $region31: #{tpu_custom_call.1} parent=5 // pred_region
        %s186 = ssub.s32 %s16, 1
        %s187 = sand.u32 %s29, 1
        %s188 = scalar_lea.sflag [#allocation3], %s187
        %s189 = sand.u32 %s29, 1
        %s190 = smul.addr %s189, 128
        %s191 = scalar_lea.vmem [#allocation2], %s190
        // Predicated region
        $region33: #{tpu_custom_call.1} parent=31 // pred_check
          %p192 = pneg %p42
        $region34: #{tpu_custom_call.1} parent=31 // pred_check_branch
          %194 = sbr.rel (%p192) target = $region36
        $region35: #{tpu_custom_call.1} parent=31 // pred_region
          %196 = dma.done %s188, 2048
        $region36: #{tpu_custom_call.1} parent=31 // pred_fallthru
          _
        // Predicated region
        $region37: #{tpu_custom_call.1} parent=31 // pred_check
          %p197 = pneg %p63
        $region38: #{tpu_custom_call.1} parent=31 // pred_check_branch
          %199 = sbr.rel (%p197) target = $region40
        $region39: #{tpu_custom_call.1} parent=31 // pred_region
          %201 = dma.done [#allocation6], 4096
        $region40: #{tpu_custom_call.1} parent=31 // pred_fallthru
          _
        // Predicated region
        $region41: #{tpu_custom_call.1} parent=31 // pred_check
          %p202 = pneg %p84
        $region42: #{tpu_custom_call.1} parent=31 // pred_check_branch
          %204 = sbr.rel (%p202) target = $region44
        $region43: #{tpu_custom_call.1} parent=31 // pred_region
          %206 = dma.done [#allocation6], 128
        $region44: #{tpu_custom_call.1} parent=31 // pred_fallthru
          _
        %s207 = sand.u32 %s29, 1
        %s208 = scalar_lea.sflag [#allocation3], %s207
        %s209 = sand.u32 %s29, 1
        %s210 = smul.addr %s209, 128
        %s211 = scalar_lea.vmem [#allocation2], %s210
        %p212 = pneg %p42
        %p213 = pneg %p39
        %p214 = pneg %p63
        %p215 = pneg %p60
        %p216 = pneg %p84
        %p217 = pneg %p81
        %p218 = pneg %p110
        %p219 = pneg %p107
        %s220 = sand.u32 %s97, 1
        %s221 = scalar_lea.sflag [#allocation4], %s220
        %s222 = sand.u32 %s97, 1
        %s223 = smul.addr %s222, 128
        %s224 = scalar_lea.vmem [#allocation8], %s223
        %s225 = smul.u32 4, %s21
        %s226 = smul.u32 4, %s21
        %v228 = vld [vmem:[%s191] sm:$0xff]
        %v229 = vld [vmem:[%s191 + $0x8] sm:$0xff]
        %v230 = vld [vmem:[%s191 + $0x10] sm:$0xff]
        %v231 = vld [vmem:[%s191 + $0x18] sm:$0xff]
        %v232 = vld [vmem:[%s191 + $0x20] sm:$0xff]
        %v233 = vld [vmem:[%s191 + $0x28] sm:$0xff]
        %v234 = vld [vmem:[%s191 + $0x30] sm:$0xff]
        %v235 = vld [vmem:[%s191 + $0x38] sm:$0xff]
        %v236 = vld [vmem:[%s191 + $0x40] sm:$0xff]
        %v237 = vld [vmem:[%s191 + $0x48] sm:$0xff]
        %v238 = vld [vmem:[%s191 + $0x50] sm:$0xff]
        %v239 = vld [vmem:[%s191 + $0x58] sm:$0xff]
        %v240 = vld [vmem:[%s191 + $0x60] sm:$0xff]
        %v241 = vld [vmem:[%s191 + $0x68] sm:$0xff]
        %v242 = vld [vmem:[%s191 + $0x70] sm:$0xff]
        %v243 = vld [vmem:[%s191 + $0x78] sm:$0xff]
        %v244 = vpack.c.bf16 %v229, %v228
        %v245 = vpack.c.bf16 %v231, %v230
        %v246 = vpack.c.bf16 %v233, %v232
        %v247 = vpack.c.bf16 %v235, %v234
        %v248 = vpack.c.bf16 %v237, %v236
        %v249 = vpack.c.bf16 %v239, %v238
        %v250 = vpack.c.bf16 %v241, %v240
        %v251 = vpack.c.bf16 %v243, %v242
        %v252 = vld [vmem:[#allocation5] sm:$0xff]
        %v253 = vld [vmem:[#allocation5 + $0x8] sm:$0xff]
        %v254 = vld [vmem:[#allocation5 + $0x10] sm:$0xff]
        %v255 = vld [vmem:[#allocation5 + $0x18] sm:$0xff]
        %v256 = vld [vmem:[#allocation5 + $0x20] sm:$0xff]
        %v257 = vld [vmem:[#allocation5 + $0x28] sm:$0xff]
        %v258 = vld [vmem:[#allocation5 + $0x30] sm:$0xff]
        %v259 = vld [vmem:[#allocation5 + $0x38] sm:$0xff]
        %v260 = vld [vmem:[#allocation5 + $0x40] sm:$0xff]
        %v261 = vld [vmem:[#allocation5 + $0x48] sm:$0xff]
        %v262 = vld [vmem:[#allocation5 + $0x50] sm:$0xff]
        %v263 = vld [vmem:[#allocation5 + $0x58] sm:$0xff]
        %v264 = vld [vmem:[#allocation5 + $0x60] sm:$0xff]
        %v265 = vld [vmem:[#allocation5 + $0x68] sm:$0xff]
        %v266 = vld [vmem:[#allocation5 + $0x70] sm:$0xff]
        %v267 = vld [vmem:[#allocation5 + $0x78] sm:$0xff]
        %v268 = vld [vmem:[#allocation5 + $0x80] sm:$0xff]
        %v269 = vld [vmem:[#allocation5 + $0x88] sm:$0xff]
        %v270 = vld [vmem:[#allocation5 + $0x90] sm:$0xff]
        %v271 = vld [vmem:[#allocation5 + $0x98] sm:$0xff]
        %v272 = vld [vmem:[#allocation5 + $0xa0] sm:$0xff]
        %v273 = vld [vmem:[#allocation5 + $0xa8] sm:$0xff]
        %v274 = vld [vmem:[#allocation5 + $0xb0] sm:$0xff]
        %v275 = vld [vmem:[#allocation5 + $0xb8] sm:$0xff]
        %v276 = vld [vmem:[#allocation5 + $0xc0] sm:$0xff]
        %v277 = vld [vmem:[#allocation5 + $0xc8] sm:$0xff]
        %v278 = vld [vmem:[#allocation5 + $0xd0] sm:$0xff]
        %v279 = vld [vmem:[#allocation5 + $0xd8] sm:$0xff]
        %v280 = vld [vmem:[#allocation5 + $0xe0] sm:$0xff]
        %v281 = vld [vmem:[#allocation5 + $0xe8] sm:$0xff]
        %v282 = vld [vmem:[#allocation5 + $0xf0] sm:$0xff]
        %v283 = vld [vmem:[#allocation5 + $0xf8] sm:$0xff]
        %v292 = vunpack.c.l.b16 %v244
        %v293 = vunpack.c.h.b16 %v244
        %v294 = vunpack.c.l.b16 %v245
        %v295 = vunpack.c.h.b16 %v245
        %v296 = vunpack.c.l.b16 %v246
        %v297 = vunpack.c.h.b16 %v246
        %v298 = vunpack.c.l.b16 %v247
        %v299 = vunpack.c.h.b16 %v247
        %v300 = vunpack.c.l.b16 %v248
        %v301 = vunpack.c.h.b16 %v248
        %v302 = vunpack.c.l.b16 %v249
        %v303 = vunpack.c.h.b16 %v249
        %v304 = vunpack.c.l.b16 %v250
        %v305 = vunpack.c.h.b16 %v250
        %v306 = vunpack.c.l.b16 %v251
        %v307 = vunpack.c.h.b16 %v251
        %v308 = vpack.c.b16 %v294, %v292
        %v309 = vpack.c.b16 %v295, %v293
        %v310 = vpack.c.b16 %v298, %v296
        %v311 = vpack.c.b16 %v299, %v297
        %v312 = vpack.c.b16 %v302, %v300
        %v313 = vpack.c.b16 %v303, %v301
        %v314 = vpack.c.b16 %v306, %v304
        %v315 = vpack.c.b16 %v307, %v305
        %v356 = vunpack.c.l.b16 %v252
        %v357 = vunpack.c.h.b16 %v252
        %v358 = vunpack.c.l.b16 %v253
        %v359 = vunpack.c.h.b16 %v253
        %v360 = vunpack.c.l.b16 %v254
        %v361 = vunpack.c.h.b16 %v254
        %v362 = vunpack.c.l.b16 %v255
        %v363 = vunpack.c.h.b16 %v255
        %v364 = vunpack.c.l.b16 %v256
        %v365 = vunpack.c.h.b16 %v256
        %v366 = vunpack.c.l.b16 %v257
        %v367 = vunpack.c.h.b16 %v257
        %v368 = vunpack.c.l.b16 %v258
        %v369 = vunpack.c.h.b16 %v258
        %v370 = vunpack.c.l.b16 %v259
        %v371 = vunpack.c.h.b16 %v259
        %v372 = vunpack.c.l.b16 %v260
        %v373 = vunpack.c.h.b16 %v260
        %v374 = vunpack.c.l.b16 %v261
        %v375 = vunpack.c.h.b16 %v261
        %v376 = vunpack.c.l.b16 %v262
        %v377 = vunpack.c.h.b16 %v262
        %v378 = vunpack.c.l.b16 %v263
        %v379 = vunpack.c.h.b16 %v263
        %v380 = vunpack.c.l.b16 %v264
        %v381 = vunpack.c.h.b16 %v264
        %v382 = vunpack.c.l.b16 %v265
        %v383 = vunpack.c.h.b16 %v265
        %v384 = vunpack.c.l.b16 %v266
        %v385 = vunpack.c.h.b16 %v266
        %v386 = vunpack.c.l.b16 %v267
        %v387 = vunpack.c.h.b16 %v267
        %v388 = vunpack.c.l.b16 %v268
        %v389 = vunpack.c.h.b16 %v268
        %v390 = vunpack.c.l.b16 %v269
        %v391 = vunpack.c.h.b16 %v269
        %v392 = vunpack.c.l.b16 %v270
        %v393 = vunpack.c.h.b16 %v270
        %v394 = vunpack.c.l.b16 %v271
        %v395 = vunpack.c.h.b16 %v271
        %v396 = vunpack.c.l.b16 %v272
        %v397 = vunpack.c.h.b16 %v272
        %v398 = vunpack.c.l.b16 %v273
        %v399 = vunpack.c.h.b16 %v273
        %v400 = vunpack.c.l.b16 %v274
        %v401 = vunpack.c.h.b16 %v274
        %v402 = vunpack.c.l.b16 %v275
        %v403 = vunpack.c.h.b16 %v275
        %v404 = vunpack.c.l.b16 %v276
        %v405 = vunpack.c.h.b16 %v276
        %v406 = vunpack.c.l.b16 %v277
        %v407 = vunpack.c.h.b16 %v277
        %v408 = vunpack.c.l.b16 %v278
        %v409 = vunpack.c.h.b16 %v278
        %v410 = vunpack.c.l.b16 %v279
        %v411 = vunpack.c.h.b16 %v279
        %v412 = vunpack.c.l.b16 %v280
        %v413 = vunpack.c.h.b16 %v280
        %v414 = vunpack.c.l.b16 %v281
        %v415 = vunpack.c.h.b16 %v281
        %v416 = vunpack.c.l.b16 %v282
        %v417 = vunpack.c.h.b16 %v282
        %v418 = vunpack.c.l.b16 %v283
        %v419 = vunpack.c.h.b16 %v283
        %v420 = vpack.c.b16 %v358, %v356
        %v421 = vpack.c.b16 %v359, %v357
        %v422 = vpack.c.b16 %v362, %v360
        %v423 = vpack.c.b16 %v363, %v361
        %v424 = vpack.c.b16 %v366, %v364
        %v425 = vpack.c.b16 %v367, %v365
        %v426 = vpack.c.b16 %v370, %v368
        %v427 = vpack.c.b16 %v371, %v369
        %v428 = vpack.c.b16 %v374, %v372
        %v429 = vpack.c.b16 %v375, %v373
        %v430 = vpack.c.b16 %v378, %v376
        %v431 = vpack.c.b16 %v379, %v377
        %v432 = vpack.c.b16 %v382, %v380
        %v433 = vpack.c.b16 %v383, %v381
        %v434 = vpack.c.b16 %v386, %v384
        %v435 = vpack.c.b16 %v387, %v385
        %v436 = vpack.c.b16 %v390, %v388
        %v437 = vpack.c.b16 %v391, %v389
        %v438 = vpack.c.b16 %v394, %v392
        %v439 = vpack.c.b16 %v395, %v393
        %v440 = vpack.c.b16 %v398, %v396
        %v441 = vpack.c.b16 %v399, %v397
        %v442 = vpack.c.b16 %v402, %v400
        %v443 = vpack.c.b16 %v403, %v401
        %v444 = vpack.c.b16 %v406, %v404
        %v445 = vpack.c.b16 %v407, %v405
        %v446 = vpack.c.b16 %v410, %v408
        %v447 = vpack.c.b16 %v411, %v409
        %v448 = vpack.c.b16 %v414, %v412
        %v449 = vpack.c.b16 %v415, %v413
        %v450 = vpack.c.b16 %v418, %v416
        %v451 = vpack.c.b16 %v419, %v417
        %484 = vmatpush.bf16.msra.mxu0 %v434
        %485 = vmatpush.bf16.msra.mxu0 %v432
        %486 = vmatpush.bf16.msra.mxu0 %v430
        %487 = vmatpush.bf16.msra.mxu0 %v428
        %488 = vmatpush.bf16.msra.mxu0 %v426
        %489 = vmatpush.bf16.msra.mxu0 %v424
        %490 = vmatpush.bf16.msra.mxu0 %v422
        %491 = vmatpush.bf16.msra.mxu0 %v420
        %492 = vmatmul.bf16.gmra.mxu0 %v308
        %v493 = vpop.f32.mrf.mxu0
        %v494 = vadd.f32 0.0, %v493
        %v495 = vpop.f32.mrf.mxu0
        %v496 = vadd.f32 0.0, %v495
        %497 = vmatmul.bf16.gmra.mxu0 %v310
        %v498 = vpop.f32.mrf.mxu0
        %v499 = vadd.f32 0.0, %v498
        %v500 = vpop.f32.mrf.mxu0
        %v501 = vadd.f32 0.0, %v500
        %502 = vmatmul.bf16.gmra.mxu0 %v312
        %v503 = vpop.f32.mrf.mxu0
        %v504 = vadd.f32 0.0, %v503
        %v505 = vpop.f32.mrf.mxu0
        %v506 = vadd.f32 0.0, %v505
        %507 = vmatmul.bf16.gmra.mxu0 %v314
        %v508 = vpop.f32.mrf.mxu0
        %v509 = vadd.f32 0.0, %v508
        %v510 = vpop.f32.mrf.mxu0
        %v511 = vadd.f32 0.0, %v510
        %512 = vdwg.mxu0
        %513 = vmatpush.bf16.msra.mxu0 %v450
        %514 = vmatpush.bf16.msra.mxu0 %v448
        %515 = vmatpush.bf16.msra.mxu0 %v446
        %516 = vmatpush.bf16.msra.mxu0 %v444
        %517 = vmatpush.bf16.msra.mxu0 %v442
        %518 = vmatpush.bf16.msra.mxu0 %v440
        %519 = vmatpush.bf16.msra.mxu0 %v438
        %520 = vmatpush.bf16.msra.mxu0 %v436
        %521 = vmatmul.bf16.gmra.mxu0 %v309
        %v522 = vpop.f32.mrf.mxu0
        %v523 = vadd.f32 %v494, %v522
        %v524 = vpop.f32.mrf.mxu0
        %v525 = vadd.f32 %v496, %v524
        %526 = vmatmul.bf16.gmra.mxu0 %v311
        %v527 = vpop.f32.mrf.mxu0
        %v528 = vadd.f32 %v499, %v527
        %v529 = vpop.f32.mrf.mxu0
        %v530 = vadd.f32 %v501, %v529
        %531 = vmatmul.bf16.gmra.mxu0 %v313
        %v532 = vpop.f32.mrf.mxu0
        %v533 = vadd.f32 %v504, %v532
        %v534 = vpop.f32.mrf.mxu0
        %v535 = vadd.f32 %v506, %v534
        %536 = vmatmul.bf16.gmra.mxu0 %v315
        %v537 = vpop.f32.mrf.mxu0
        %v538 = vadd.f32 %v509, %v537
        %v539 = vpop.f32.mrf.mxu0
        %v540 = vadd.f32 %v511, %v539
        %541 = vdwg.mxu0
        %542 = vmatpush.bf16.msra.mxu0 %v435
        %543 = vmatpush.bf16.msra.mxu0 %v433
        %544 = vmatpush.bf16.msra.mxu0 %v431
        %545 = vmatpush.bf16.msra.mxu0 %v429
        %546 = vmatpush.bf16.msra.mxu0 %v427
        %547 = vmatpush.bf16.msra.mxu0 %v425
        %548 = vmatpush.bf16.msra.mxu0 %v423
        %549 = vmatpush.bf16.msra.mxu0 %v421
        %550 = vmatmul.bf16.gmra.mxu0 %v308
        %v551 = vpop.f32.mrf.mxu0
        %v552 = vadd.f32 0.0, %v551
        %v553 = vpop.f32.mrf.mxu0
        %v554 = vadd.f32 0.0, %v553
        %555 = vmatmul.bf16.gmra.mxu0 %v310
        %v556 = vpop.f32.mrf.mxu0
        %v557 = vadd.f32 0.0, %v556
        %v558 = vpop.f32.mrf.mxu0
        %v559 = vadd.f32 0.0, %v558
        %560 = vmatmul.bf16.gmra.mxu0 %v312
        %v561 = vpop.f32.mrf.mxu0
        %v562 = vadd.f32 0.0, %v561
        %v563 = vpop.f32.mrf.mxu0
        %v564 = vadd.f32 0.0, %v563
        %565 = vmatmul.bf16.gmra.mxu0 %v314
        %v566 = vpop.f32.mrf.mxu0
        %v567 = vadd.f32 0.0, %v566
        %v568 = vpop.f32.mrf.mxu0
        %v569 = vadd.f32 0.0, %v568
        %570 = vdwg.mxu0
        %571 = vmatpush.bf16.msra.mxu0 %v451
        %572 = vmatpush.bf16.msra.mxu0 %v449
        %573 = vmatpush.bf16.msra.mxu0 %v447
        %574 = vmatpush.bf16.msra.mxu0 %v445
        %575 = vmatpush.bf16.msra.mxu0 %v443
        %576 = vmatpush.bf16.msra.mxu0 %v441
        %577 = vmatpush.bf16.msra.mxu0 %v439
        %578 = vmatpush.bf16.msra.mxu0 %v437
        %579 = vmatmul.bf16.gmra.mxu0 %v309
        %v580 = vpop.f32.mrf.mxu0
        %v581 = vadd.f32 %v552, %v580
        %v582 = vpop.f32.mrf.mxu0
        %v583 = vadd.f32 %v554, %v582
        %584 = vmatmul.bf16.gmra.mxu0 %v311
        %v585 = vpop.f32.mrf.mxu0
        %v586 = vadd.f32 %v557, %v585
        %v587 = vpop.f32.mrf.mxu0
        %v588 = vadd.f32 %v559, %v587
        %589 = vmatmul.bf16.gmra.mxu0 %v313
        %v590 = vpop.f32.mrf.mxu0
        %v591 = vadd.f32 %v562, %v590
        %v592 = vpop.f32.mrf.mxu0
        %v593 = vadd.f32 %v564, %v592
        %594 = vmatmul.bf16.gmra.mxu0 %v315
        %v595 = vpop.f32.mrf.mxu0
        %v596 = vadd.f32 %v567, %v595
        %v597 = vpop.f32.mrf.mxu0
        %v598 = vadd.f32 %v569, %v597
        %599 = vdwg.mxu0
        %v600 = vpack.c.bf16 %v581, %v523
        %v601 = vpack.c.bf16 %v583, %v525
        %v602 = vpack.c.bf16 %v586, %v528
        %v603 = vpack.c.bf16 %v588, %v530
        %v604 = vpack.c.bf16 %v591, %v533
        %v605 = vpack.c.bf16 %v593, %v535
        %v606 = vpack.c.bf16 %v596, %v538
        %v607 = vpack.c.bf16 %v598, %v540
        %v608 = vld [vmem:[#allocation7] sm:$0xf]
        %v609 = vld [vmem:[#allocation7 + $0x4] sm:$0xf]
        %v612 = vunpack.c.l.b16 %v608
        %v613 = vunpack.c.l.b16 %v609
        %v614 = vpack.c.b16 %v613, %v612
        %v617 = vunpack.c.l.b16 %v600
        %v618 = vunpack.c.h.b16 %v600
        %v619 = vunpack.c.l.b16 %v601
        %v620 = vunpack.c.h.b16 %v601
        %v621 = vpack.c.b16 %v619, %v617
        %v622 = vpack.c.b16 %v620, %v618
        %vm625 = vcmask 130048
        %v627 = vsel %vm625, %v614, 0
        %629 = vmatpush.bf16.msra.mxu0 0
        %630 = vmatpush.bf16.msra.mxu0 0
        %631 = vmatpush.bf16.msra.mxu0 0
        %632 = vmatpush.bf16.msra.mxu0 0
        %633 = vmatpush.bf16.msra.mxu0 0
        %634 = vmatpush.bf16.msra.mxu0 0
        %635 = vmatpush.bf16.msra.mxu0 0
        %636 = vmatpush.bf16.msra.mxu0 %v621
        %637 = vmatmul.bf16.gmra.mxu0 %v627
        %v638 = vpop.f32.mrf.mxu0
        %v639 = vadd.f32 0.0, %v638
        %v640 = vpop.f32.mrf.mxu0
        %v641 = vadd.f32 0.0, %v640
        %642 = vdwg.mxu0
        %643 = vmatpush.bf16.msra.mxu0 0
        %644 = vmatpush.bf16.msra.mxu0 0
        %645 = vmatpush.bf16.msra.mxu0 0
        %646 = vmatpush.bf16.msra.mxu0 0
        %647 = vmatpush.bf16.msra.mxu0 0
        %648 = vmatpush.bf16.msra.mxu0 0
        %649 = vmatpush.bf16.msra.mxu0 0
        %650 = vmatpush.bf16.msra.mxu0 %v622
        %651 = vmatmul.bf16.gmra.mxu0 %v627
        %v652 = vpop.f32.mrf.mxu0
        %v653 = vadd.f32 0.0, %v652
        %v654 = vpop.f32.mrf.mxu0
        %v655 = vadd.f32 0.0, %v654
        %656 = vdwg.mxu0
        %v659 = vunpack.c.l.b16 %v602
        %v660 = vunpack.c.h.b16 %v602
        %v661 = vunpack.c.l.b16 %v603
        %v662 = vunpack.c.h.b16 %v603
        %v663 = vpack.c.b16 %v661, %v659
        %v664 = vpack.c.b16 %v662, %v660
        %667 = vmatpush.bf16.msra.mxu0 0
        %668 = vmatpush.bf16.msra.mxu0 0
        %669 = vmatpush.bf16.msra.mxu0 0
        %670 = vmatpush.bf16.msra.mxu0 0
        %671 = vmatpush.bf16.msra.mxu0 0
        %672 = vmatpush.bf16.msra.mxu0 0
        %673 = vmatpush.bf16.msra.mxu0 0
        %674 = vmatpush.bf16.msra.mxu0 %v663
        %675 = vmatmul.bf16.gmra.mxu0 %v627
        %v676 = vpop.f32.mrf.mxu0
        %v677 = vadd.f32 0.0, %v676
        %v678 = vpop.f32.mrf.mxu0
        %v679 = vadd.f32 0.0, %v678
        %680 = vdwg.mxu0
        %681 = vmatpush.bf16.msra.mxu0 0
        %682 = vmatpush.bf16.msra.mxu0 0
        %683 = vmatpush.bf16.msra.mxu0 0
        %684 = vmatpush.bf16.msra.mxu0 0
        %685 = vmatpush.bf16.msra.mxu0 0
        %686 = vmatpush.bf16.msra.mxu0 0
        %687 = vmatpush.bf16.msra.mxu0 0
        %688 = vmatpush.bf16.msra.mxu0 %v664
        %689 = vmatmul.bf16.gmra.mxu0 %v627
        %v690 = vpop.f32.mrf.mxu0
        %v691 = vadd.f32 0.0, %v690
        %v692 = vpop.f32.mrf.mxu0
        %v693 = vadd.f32 0.0, %v692
        %694 = vdwg.mxu0
        %v697 = vunpack.c.l.b16 %v604
        %v698 = vunpack.c.h.b16 %v604
        %v699 = vunpack.c.l.b16 %v605
        %v700 = vunpack.c.h.b16 %v605
        %v701 = vpack.c.b16 %v699, %v697
        %v702 = vpack.c.b16 %v700, %v698
        %705 = vmatpush.bf16.msra.mxu0 0
        %706 = vmatpush.bf16.msra.mxu0 0
        %707 = vmatpush.bf16.msra.mxu0 0
        %708 = vmatpush.bf16.msra.mxu0 0
        %709 = vmatpush.bf16.msra.mxu0 0
        %710 = vmatpush.bf16.msra.mxu0 0
        %711 = vmatpush.bf16.msra.mxu0 0
        %712 = vmatpush.bf16.msra.mxu0 %v701
        %713 = vmatmul.bf16.gmra.mxu0 %v627
        %v714 = vpop.f32.mrf.mxu0
        %v715 = vadd.f32 0.0, %v714
        %v716 = vpop.f32.mrf.mxu0
        %v717 = vadd.f32 0.0, %v716
        %718 = vdwg.mxu0
        %719 = vmatpush.bf16.msra.mxu0 0
        %720 = vmatpush.bf16.msra.mxu0 0
        %721 = vmatpush.bf16.msra.mxu0 0
        %722 = vmatpush.bf16.msra.mxu0 0
        %723 = vmatpush.bf16.msra.mxu0 0
        %724 = vmatpush.bf16.msra.mxu0 0
        %725 = vmatpush.bf16.msra.mxu0 0
        %726 = vmatpush.bf16.msra.mxu0 %v702
        %727 = vmatmul.bf16.gmra.mxu0 %v627
        %v728 = vpop.f32.mrf.mxu0
        %v729 = vadd.f32 0.0, %v728
        %v730 = vpop.f32.mrf.mxu0
        %v731 = vadd.f32 0.0, %v730
        %732 = vdwg.mxu0
        %v735 = vunpack.c.l.b16 %v606
        %v736 = vunpack.c.h.b16 %v606
        %v737 = vunpack.c.l.b16 %v607
        %v738 = vunpack.c.h.b16 %v607
        %v739 = vpack.c.b16 %v737, %v735
        %v740 = vpack.c.b16 %v738, %v736
        %743 = vmatpush.bf16.msra.mxu0 0
        %744 = vmatpush.bf16.msra.mxu0 0
        %745 = vmatpush.bf16.msra.mxu0 0
        %746 = vmatpush.bf16.msra.mxu0 0
        %747 = vmatpush.bf16.msra.mxu0 0
        %748 = vmatpush.bf16.msra.mxu0 0
        %749 = vmatpush.bf16.msra.mxu0 0
        %750 = vmatpush.bf16.msra.mxu0 %v739
        %751 = vmatmul.bf16.gmra.mxu0 %v627
        %v752 = vpop.f32.mrf.mxu0
        %v753 = vadd.f32 0.0, %v752
        %v754 = vpop.f32.mrf.mxu0
        %v755 = vadd.f32 0.0, %v754
        %756 = vdwg.mxu0
        %757 = vmatpush.bf16.msra.mxu0 0
        %758 = vmatpush.bf16.msra.mxu0 0
        %759 = vmatpush.bf16.msra.mxu0 0
        %760 = vmatpush.bf16.msra.mxu0 0
        %761 = vmatpush.bf16.msra.mxu0 0
        %762 = vmatpush.bf16.msra.mxu0 0
        %763 = vmatpush.bf16.msra.mxu0 0
        %764 = vmatpush.bf16.msra.mxu0 %v740
        %765 = vmatmul.bf16.gmra.mxu0 %v627
        %v766 = vpop.f32.mrf.mxu0
        %v767 = vadd.f32 0.0, %v766
        %v768 = vpop.f32.mrf.mxu0
        %v769 = vadd.f32 0.0, %v768
        %770 = vdwg.mxu0
        %771 = vst [vmem:[%s224] sm:$0xff] %v639
        %772 = vst [vmem:[%s224 + $0x8] sm:$0xff] %v653
        %773 = vst [vmem:[%s224 + $0x10] sm:$0xff] %v641
        %774 = vst [vmem:[%s224 + $0x18] sm:$0xff] %v655
        %775 = vst [vmem:[%s224 + $0x20] sm:$0xff] %v677
        %776 = vst [vmem:[%s224 + $0x28] sm:$0xff] %v691
        %777 = vst [vmem:[%s224 + $0x30] sm:$0xff] %v679
        %778 = vst [vmem:[%s224 + $0x38] sm:$0xff] %v693
        %779 = vst [vmem:[%s224 + $0x40] sm:$0xff] %v715
        %780 = vst [vmem:[%s224 + $0x48] sm:$0xff] %v729
        %781 = vst [vmem:[%s224 + $0x50] sm:$0xff] %v717
        %782 = vst [vmem:[%s224 + $0x58] sm:$0xff] %v731
        %783 = vst [vmem:[%s224 + $0x60] sm:$0xff] %v753
        %784 = vst [vmem:[%s224 + $0x68] sm:$0xff] %v767
        %785 = vst [vmem:[%s224 + $0x70] sm:$0xff] %v755
        %786 = vst [vmem:[%s224 + $0x78] sm:$0xff] %v769
        %s787 = sand.u32 %s97, 1
        %s788 = scalar_lea.sflag [#allocation4], %s787
        %s789 = sand.u32 %s97, 1
        %s790 = smul.addr %s789, 128
        %s791 = scalar_lea.vmem [#allocation8], %s790
        // Predicated region
        $region45: #{tpu_custom_call.1} parent=31 // pred_check
          %p792 = pneg %p107
        $region46: #{tpu_custom_call.1} parent=31 // pred_check_branch
          %794 = sbr.rel (%p792) target = $region48
        $region47: #{tpu_custom_call.1} parent=31 // pred_region
          %s795 = smul.u32 4, %s21
          %797 = vsyncadd %s788, 0
          %s798 = smul.addr %s795, 4
          %s799 = smul.addr %s798, 8
          %s800 = scalar_lea.hbm %s3, %s799
          %s801 = sshll.u32 %s791, 4
          %s802 = int_to_ptr.vmem [resolvable:$true] %s801
          %s803 = sshll.u32 %s800, 4
          %s804 = int_to_ptr.hbm [resolvable:$true] %s803
          %809 = dma.vmem_to_hbm [thread:$0]  %s802, 2048, %s804, %s788, 256, 256, 16
        $region48: #{tpu_custom_call.1} parent=31 // pred_fallthru
          _
      $region32: #{tpu_custom_call.1} parent=5 // pred_fallthru
        _
      %p810 = scmp.le.s32.totalorder 2, %s16
      // Predicated region
      $region49: #{tpu_custom_call.1} parent=5 // pred_check
        %p811 = pneg %p810
      $region50: #{tpu_custom_call.1} parent=5 // pred_check_branch
        %813 = sbr.rel (%p811) target = $region52
      $region51: #{tpu_custom_call.1} parent=5 // pred_region
        %s814 = ssub.s32 %s16, 2
        // Predicated region
        $region53: #{tpu_custom_call.1} parent=51 // pred_check
          %p815 = pneg %p113
        $region54: #{tpu_custom_call.1} parent=51 // pred_check_branch
          %817 = sbr.rel (%p815) target = $region56
        $region55: #{tpu_custom_call.1} parent=51 // pred_region
          %s818 = sand.u32 %s98, 1
          %s819 = scalar_lea.sflag [#allocation4], %s818
          %s820 = sand.u32 %s98, 1
          %s821 = smul.addr %s820, 128
          %s822 = scalar_lea.vmem [#allocation8], %s821
          %824 = dma.done %s819, 2048
        $region56: #{tpu_custom_call.1} parent=51 // pred_fallthru
          _
      $region52: #{tpu_custom_call.1} parent=5 // pred_fallthru
        _
    $region6: #{tpu_custom_call.1} parent=1 // loop_footer
      %s20 = sadd.s32 1, %s16
    $region7: #{tpu_custom_call.1} parent=1 // loop_footer_branch
      %15 = sbr.rel target = $region3
    $region8: #{tpu_custom_call.1} parent=1 // loop_exit
      _
    %825 = vsyncpa [#allocation3], 1
    %s826 = scalar_lea.sflag [#allocation3], 1
    %827 = vsyncpa %s826, 1
    %828 = vsyncpa [#allocation6], 1
    %829 = vsyncpa [#allocation4], 1
    %s830 = scalar_lea.sflag [#allocation4], 1
    %831 = vsyncpa %s830, 1

// kernel: tpu_custom_call.1
$region0: #{tpu_custom_call.1}
  #allocation0 [shape = 'u32[]', space=smem, size = 0x4, offset = 0x4, fixed_abs, tag = 'smem constant byte address 0x4 - core index']
  #allocation1 [shape = 'u32[72,128]{1,0:T(1,128)}', space=vmem, size = 0x9000, scoped, tag = 'internal scratch']
  %s0 = inlined_call_operand.hbm [shape: f32[8,16,256], index: 0, kind: input, shape index: {}]
  %s1 = inlined_call_operand.hbm [shape: bf16[256,256], index: 1, kind: input, shape index: {}]
  %s2 = inlined_call_operand.hbm [shape: bf16[16,16], index: 2, kind: input, shape index: {}]
  %s3 = inlined_call_operand.hbm [shape: f32[8,16,256], index: 3, kind: output, shape index: {}]
  %s4 = sld [smem:[#allocation0]]
  $region57: #{tpu_custom_call.1} parent=0
    _
  %s6 = ssub.s32 1, %s4
  %s7 = scalar_select 0, %s6, %s4
  $region1: #{tpu_custom_call.1} parent=0
    #allocation2 [shape = 'u8[131072]{0}', space=vmem, size = 0x20000, scoped, tag = 'input window, operand 0']
    #allocation3 [shape = 's32[2]{0}', space=sflag, size = 0x8, scoped, tag = 'scoped memory for tpu_custom_call.1']
    #allocation4 [shape = 's32[2]{0}', space=sflag, size = 0x8, scoped, tag = 'scoped memory for tpu_custom_call.1']
    #allocation5 [shape = 'u8[131072]{0}', space=vmem, size = 0x20000, scoped, tag = 'input window, operand 1, single buffered']
    #allocation6 [shape = 's32[1]{0}', space=sflag, size = 0x4, scoped, tag = 'scoped memory for tpu_custom_call.1']
    #allocation7 [shape = 'u8[4096]{0}', space=vmem, size = 0x1000, scoped, tag = 'input window, operand 2, single buffered']
    #allocation8 [shape = 'u8[131072]{0}', space=vmem, size = 0x20000, scoped, tag = 'output window, operand 0']
    %8 = vsyncpa [#allocation3], 0
    %s9 = scalar_lea.sflag [#allocation3], 1
    %10 = vsyncpa %s9, 0
    %11 = vsyncpa [#allocation6], 0
    %12 = vsyncpa [#allocation4], 0
    %s13 = scalar_lea.sflag [#allocation4], 1
    %14 = vsyncpa %s13, 0
    loop: start=0, step=1, limit=4
    $region2: #{tpu_custom_call.1} parent=1 // loop_pre_header
      _
    $region3: #{tpu_custom_call.1} parent=1 // loop_header
      %s16 = sphi 0, %s20
      %p17 = scmp.ge.s32.totalorder %s16, 4
      %s26 = sphi 0, %s28
      %s29 = sphi 0, %s26
      %s30 = sphi 0, %s29
      %s46 = sphi 0, %s30
      %s50 = sphi 0, %s50
      %s52 = sphi 0, %s50
      %s53 = sphi 0, %s52
      %s67 = sphi 0, %s53
      %s71 = sphi 0, %s71
      %s73 = sphi 0, %s71
      %s74 = sphi 0, %s73
      %s88 = sphi 0, %s74
      %s94 = sphi 0, %s96
      %s97 = sphi 0, %s94
      %s98 = sphi 0, %s97
      %s114 = sphi 0, %s98
    $region4: #{tpu_custom_call.1} parent=1 // loop_header_branch
      %19 = sbr.rel (%p17) target = $region8
    $region5: #{tpu_custom_call.1} parent=1 // loop_body
      %s21 = ssub.s32 %s16, 1
      %s22 = ssub.s32 %s16, 2
      %s23 = sadd.s32 %s16, 1
      %s24 = ssub.s32 %s16, %s23
      %p25 = scmp.eq.s32.totalorder %s24, 0
      %s27 = sadd.s32 %s26, 1
      %s28 = scalar_select %p25, %s26, %s27
      %p31 = pneg %p25
      %p32 = scmp.eq.s32.totalorder %s16, 1
      %p33 = por %p31, %p32
      %p34 = scmp.ne.s32.totalorder %s26, %s29
      %p35 = scmp.eq.s32.totalorder %s16, 0
      %p36 = por %p34, %p35
      %p37 = scmp.ne.s32.totalorder %s26, %s29
      %p38 = scmp.eq.s32.totalorder %s21, 1
      %p39 = por %p37, %p38
      %p40 = scmp.ne.s32.totalorder %s29, %s30
      %p41 = scmp.eq.s32.totalorder %s21, 0
      %p42 = por %p40, %p41
      %p43 = scmp.ne.s32.totalorder %s29, %s30
      %p44 = scmp.eq.s32.totalorder %s22, 1
      %p45 = por %p43, %p44
      %p47 = scmp.ne.s32.totalorder %s30, %s46
      %p48 = scmp.eq.s32.totalorder %s22, 0
      %p49 = por %p47, %p48
      %s51 = sadd.s32 %s50, 1
      %p54 = scmp.eq.s32.totalorder %s16, 1
      %p55 = scmp.ne.s32.totalorder %s50, %s52
      %p56 = scmp.eq.s32.totalorder %s16, 0
      %p57 = por %p55, %p56
      %p58 = scmp.ne.s32.totalorder %s50, %s52
      %p59 = scmp.eq.s32.totalorder %s21, 1
      %p60 = por %p58, %p59
      %p61 = scmp.ne.s32.totalorder %s52, %s53
      %p62 = scmp.eq.s32.totalorder %s21, 0
      %p63 = por %p61, %p62
      %p64 = scmp.ne.s32.totalorder %s52, %s53
      %p65 = scmp.eq.s32.totalorder %s22, 1
      %p66 = por %p64, %p65
      %p68 = scmp.ne.s32.totalorder %s53, %s67
      %p69 = scmp.eq.s32.totalorder %s22, 0
      %p70 = por %p68, %p69
      %s72 = sadd.s32 %s71, 1
      %p75 = scmp.eq.s32.totalorder %s16, 1
      %p76 = scmp.ne.s32.totalorder %s71, %s73
      %p77 = scmp.eq.s32.totalorder %s16, 0
      %p78 = por %p76, %p77
      %p79 = scmp.ne.s32.totalorder %s71, %s73
      %p80 = scmp.eq.s32.totalorder %s21, 1
      %p81 = por %p79, %p80
      %p82 = scmp.ne.s32.totalorder %s73, %s74
      %p83 = scmp.eq.s32.totalorder %s21, 0
      %p84 = por %p82, %p83
      %p85 = scmp.ne.s32.totalorder %s73, %s74
      %p86 = scmp.eq.s32.totalorder %s22, 1
      %p87 = por %p85, %p86
      %p89 = scmp.ne.s32.totalorder %s74, %s88
      %p90 = scmp.eq.s32.totalorder %s22, 0
      %p91 = por %p89, %p90
      %s92 = ssub.s32 %s16, %s23
      %p93 = scmp.eq.s32.totalorder %s92, 0
      %s95 = sadd.s32 %s94, 1
      %s96 = scalar_select %p93, %s94, %s95
      %p99 = pneg %p93
      %p100 = scmp.eq.s32.totalorder %s16, 1
      %p101 = por %p99, %p100
      %p102 = scmp.ne.s32.totalorder %s94, %s97
      %p103 = scmp.eq.s32.totalorder %s16, 0
      %p104 = por %p102, %p103
      %p105 = scmp.ne.s32.totalorder %s94, %s97
      %p106 = scmp.eq.s32.totalorder %s21, 1
      %p107 = por %p105, %p106
      %p108 = scmp.ne.s32.totalorder %s97, %s98
      %p109 = scmp.eq.s32.totalorder %s21, 0
      %p110 = por %p108, %p109
      %p111 = scmp.ne.s32.totalorder %s97, %s98
      %p112 = scmp.eq.s32.totalorder %s22, 1
      %p113 = por %p111, %p112
      %p115 = scmp.ne.s32.totalorder %s98, %s114
      %p116 = scmp.eq.s32.totalorder %s22, 0
      %p117 = por %p115, %p116
      %p118 = scmp.le.s32.totalorder 1, %s16
      %p119 = scmp.lt.s32.totalorder %s16, 3
      %p120 = pnand %p118, %p119
      %p121 = pneg %p120
      // Predicated region
      $region9: #{tpu_custom_call.1} parent=5 // pred_check
        _
      $region10: #{tpu_custom_call.1} parent=5 // pred_check_branch
        %123 = sbr.rel (%p120) target = $region12
      $region11: #{tpu_custom_call.1} parent=5 // pred_region
        %s124 = ssub.s32 %s16, 1
        // Predicated region
        $region13: #{tpu_custom_call.1} parent=11 // pred_check
          %p125 = pneg %p63
        $region14: #{tpu_custom_call.1} parent=11 // pred_check_branch
          %127 = sbr.rel (%p125) target = $region16
        $region15: #{tpu_custom_call.1} parent=11 // pred_region
          %129 = vsyncadd [#allocation6], 0
          %s130 = sshll.u32 %s1, 4
          %s131 = int_to_ptr.hbm [resolvable:$true] %s130
          %s132 = sshll.u32 [#allocation5], 4
          %s133 = int_to_ptr.vmem [resolvable:$true] %s132
          %138 = dma.hbm_to_vmem [thread:$0]  %s131, 4096, %s133, [#allocation6], 128, 128, 8
        $region16: #{tpu_custom_call.1} parent=11 // pred_fallthru
          _
        // Predicated region
        $region17: #{tpu_custom_call.1} parent=11 // pred_check
          %p139 = pneg %p84
        $region18: #{tpu_custom_call.1} parent=11 // pred_check_branch
          %141 = sbr.rel (%p139) target = $region20
        $region19: #{tpu_custom_call.1} parent=11 // pred_region
          %143 = vsyncadd [#allocation6], 0
          %s144 = sshll.u32 %s2, 4
          %s145 = int_to_ptr.hbm [resolvable:$true] %s144
          %s146 = sshll.u32 [#allocation7], 4
          %s147 = int_to_ptr.vmem [resolvable:$true] %s146
          %152 = dma.hbm_to_vmem [thread:$0]  %s145, 128, %s147, [#allocation6], 64, 64, 4
        $region20: #{tpu_custom_call.1} parent=11 // pred_fallthru
          _
      $region12: #{tpu_custom_call.1} parent=5 // pred_fallthru
        _
      %p153 = scmp.lt.s32.totalorder %s16, 2
      // Predicated region
      $region21: #{tpu_custom_call.1} parent=5 // pred_check
        %p154 = pneg %p153
      $region22: #{tpu_custom_call.1} parent=5 // pred_check_branch
        %156 = sbr.rel (%p154) target = $region24
      $region23: #{tpu_custom_call.1} parent=5 // pred_region
        // Predicated region
        $region25: #{tpu_custom_call.1} parent=23 // pred_check
          %p157 = pneg %p36
        $region26: #{tpu_custom_call.1} parent=23 // pred_check_branch
          %159 = sbr.rel (%p157) target = $region28
        $region27: #{tpu_custom_call.1} parent=23 // pred_region
          %s160 = sand.u32 %s26, 1
          %s161 = scalar_lea.sflag [#allocation3], %s160
          %s162 = sand.u32 %s26, 1
          %s163 = smul.addr %s162, 128
          %s164 = scalar_lea.vmem [#allocation2], %s163
          %s165 = smul.u32 4, %s16
          %167 = vsyncadd %s161, 0
          %s168 = smul.addr %s165, 4
          %s169 = smul.addr %s168, 8
          %s170 = scalar_lea.hbm %s0, %s169
          %s171 = sshll.u32 %s170, 4
          %s172 = int_to_ptr.hbm [resolvable:$true] %s171
          %s173 = sshll.u32 %s164, 4
          %s174 = int_to_ptr.vmem [resolvable:$true] %s173
          %179 = dma.hbm_to_vmem [thread:$0]  %s172, 2048, %s174, %s161, 256, 256, 16
        $region28: #{tpu_custom_call.1} parent=23 // pred_fallthru
          _
      $region24: #{tpu_custom_call.1} parent=5 // pred_fallthru
        _
      %p180 = scmp.le.s32.totalorder 1, %s16
      %p181 = scmp.lt.s32.totalorder %s16, 3
      %p182 = pnand %p180, %p181
      %p183 = pneg %p182
      // Predicated region
      $region29: #{tpu_custom_call.1} parent=5 // pred_check
        _
      $region30: #{tpu_custom_call.1} parent=5 // pred_check_branch
        %185 = sbr.rel (%p182) target = $region32
      $region31: #{tpu_custom_call.1} parent=5 // pred_region
        %s186 = ssub.s32 %s16, 1
        %s187 = sand.u32 %s29, 1
        %s188 = scalar_lea.sflag [#allocation3], %s187
        %s189 = sand.u32 %s29, 1
        %s190 = smul.addr %s189, 128
        %s191 = scalar_lea.vmem [#allocation2], %s190
        // Predicated region
        $region33: #{tpu_custom_call.1} parent=31 // pred_check
          %p192 = pneg %p42
        $region34: #{tpu_custom_call.1} parent=31 // pred_check_branch
          %194 = sbr.rel (%p192) target = $region36
        $region35: #{tpu_custom_call.1} parent=31 // pred_region
          %196 = dma.done %s188, 2048
        $region36: #{tpu_custom_call.1} parent=31 // pred_fallthru
          _
        // Predicated region
        $region37: #{tpu_custom_call.1} parent=31 // pred_check
          %p197 = pneg %p63
        $region38: #{tpu_custom_call.1} parent=31 // pred_check_branch
          %199 = sbr.rel (%p197) target = $region40
        $region39: #{tpu_custom_call.1} parent=31 // pred_region
          %201 = dma.done [#allocation6], 4096
        $region40: #{tpu_custom_call.1} parent=31 // pred_fallthru
          _
        // Predicated region
        $region41: #{tpu_custom_call.1} parent=31 // pred_check
          %p202 = pneg %p84
        $region42: #{tpu_custom_call.1} parent=31 // pred_check_branch
          %204 = sbr.rel (%p202) target = $region44
        $region43: #{tpu_custom_call.1} parent=31 // pred_region
          %206 = dma.done [#allocation6], 128
        $region44: #{tpu_custom_call.1} parent=31 // pred_fallthru
          _
        %s207 = sand.u32 %s29, 1
        %s208 = scalar_lea.sflag [#allocation3], %s207
        %s209 = sand.u32 %s29, 1
        %s210 = smul.addr %s209, 128
        %s211 = scalar_lea.vmem [#allocation2], %s210
        %p212 = pneg %p42
        %p213 = pneg %p39
        %p214 = pneg %p63
        %p215 = pneg %p60
        %p216 = pneg %p84
        %p217 = pneg %p81
        %p218 = pneg %p110
        %p219 = pneg %p107
        %s220 = sand.u32 %s97, 1
        %s221 = scalar_lea.sflag [#allocation4], %s220
        %s222 = sand.u32 %s97, 1
        %s223 = smul.addr %s222, 128
        %s224 = scalar_lea.vmem [#allocation8], %s223
        %s225 = smul.u32 4, %s21
        %s226 = smul.u32 4, %s21
        %v228 = vld [vmem:[%s191] sm:$0xff]
        %v229 = vld [vmem:[%s191 + $0x8] sm:$0xff]
        %v230 = vld [vmem:[%s191 + $0x10] sm:$0xff]
        %v231 = vld [vmem:[%s191 + $0x18] sm:$0xff]
        %v232 = vld [vmem:[%s191 + $0x20] sm:$0xff]
        %v233 = vld [vmem:[%s191 + $0x28] sm:$0xff]
        %v234 = vld [vmem:[%s191 + $0x30] sm:$0xff]
        %v235 = vld [vmem:[%s191 + $0x38] sm:$0xff]
        %v236 = vld [vmem:[%s191 + $0x40] sm:$0xff]
        %v237 = vld [vmem:[%s191 + $0x48] sm:$0xff]
        %v238 = vld [vmem:[%s191 + $0x50] sm:$0xff]
        %v239 = vld [vmem:[%s191 + $0x58] sm:$0xff]
        %v240 = vld [vmem:[%s191 + $0x60] sm:$0xff]
        %v241 = vld [vmem:[%s191 + $0x68] sm:$0xff]
        %v242 = vld [vmem:[%s191 + $0x70] sm:$0xff]
        %v243 = vld [vmem:[%s191 + $0x78] sm:$0xff]
        %v244 = vpack.c.bf16 %v229, %v228
        %v245 = vpack.c.bf16 %v231, %v230
        %v246 = vpack.c.bf16 %v233, %v232
        %v247 = vpack.c.bf16 %v235, %v234
        %v248 = vpack.c.bf16 %v237, %v236
        %v249 = vpack.c.bf16 %v239, %v238
        %v250 = vpack.c.bf16 %v241, %v240
        %v251 = vpack.c.bf16 %v243, %v242
        %v252 = vld [vmem:[#allocation5] sm:$0xff]
        %v253 = vld [vmem:[#allocation5 + $0x8] sm:$0xff]
        %v254 = vld [vmem:[#allocation5 + $0x10] sm:$0xff]
        %v255 = vld [vmem:[#allocation5 + $0x18] sm:$0xff]
        %v256 = vld [vmem:[#allocation5 + $0x20] sm:$0xff]
        %v257 = vld [vmem:[#allocation5 + $0x28] sm:$0xff]
        %v258 = vld [vmem:[#allocation5 + $0x30] sm:$0xff]
        %v259 = vld [vmem:[#allocation5 + $0x38] sm:$0xff]
        %v260 = vld [vmem:[#allocation5 + $0x40] sm:$0xff]
        %v261 = vld [vmem:[#allocation5 + $0x48] sm:$0xff]
        %v262 = vld [vmem:[#allocation5 + $0x50] sm:$0xff]
        %v263 = vld [vmem:[#allocation5 + $0x58] sm:$0xff]
        %v264 = vld [vmem:[#allocation5 + $0x60] sm:$0xff]
        %v265 = vld [vmem:[#allocation5 + $0x68] sm:$0xff]
        %v266 = vld [vmem:[#allocation5 + $0x70] sm:$0xff]
        %v267 = vld [vmem:[#allocation5 + $0x78] sm:$0xff]
        %v268 = vld [vmem:[#allocation5 + $0x80] sm:$0xff]
        %v269 = vld [vmem:[#allocation5 + $0x88] sm:$0xff]
        %v270 = vld [vmem:[#allocation5 + $0x90] sm:$0xff]
        %v271 = vld [vmem:[#allocation5 + $0x98] sm:$0xff]
        %v272 = vld [vmem:[#allocation5 + $0xa0] sm:$0xff]
        %v273 = vld [vmem:[#allocation5 + $0xa8] sm:$0xff]
        %v274 = vld [vmem:[#allocation5 + $0xb0] sm:$0xff]
        %v275 = vld [vmem:[#allocation5 + $0xb8] sm:$0xff]
        %v276 = vld [vmem:[#allocation5 + $0xc0] sm:$0xff]
        %v277 = vld [vmem:[#allocation5 + $0xc8] sm:$0xff]
        %v278 = vld [vmem:[#allocation5 + $0xd0] sm:$0xff]
        %v279 = vld [vmem:[#allocation5 + $0xd8] sm:$0xff]
        %v280 = vld [vmem:[#allocation5 + $0xe0] sm:$0xff]
        %v281 = vld [vmem:[#allocation5 + $0xe8] sm:$0xff]
        %v282 = vld [vmem:[#allocation5 + $0xf0] sm:$0xff]
        %v283 = vld [vmem:[#allocation5 + $0xf8] sm:$0xff]
        %v292 = vunpack.c.l.b16 %v244
        %v293 = vunpack.c.h.b16 %v244
        %v294 = vunpack.c.l.b16 %v245
        %v295 = vunpack.c.h.b16 %v245
        %v296 = vunpack.c.l.b16 %v246
        %v297 = vunpack.c.h.b16 %v246
        %v298 = vunpack.c.l.b16 %v247
        %v299 = vunpack.c.h.b16 %v247
        %v300 = vunpack.c.l.b16 %v248
        %v301 = vunpack.c.h.b16 %v248
        %v302 = vunpack.c.l.b16 %v249
        %v303 = vunpack.c.h.b16 %v249
        %v304 = vunpack.c.l.b16 %v250
        %v305 = vunpack.c.h.b16 %v250
        %v306 = vunpack.c.l.b16 %v251
        %v307 = vunpack.c.h.b16 %v251
        %v308 = vpack.c.b16 %v294, %v292
        %v309 = vpack.c.b16 %v295, %v293
        %v310 = vpack.c.b16 %v298, %v296
        %v311 = vpack.c.b16 %v299, %v297
        %v312 = vpack.c.b16 %v302, %v300
        %v313 = vpack.c.b16 %v303, %v301
        %v314 = vpack.c.b16 %v306, %v304
        %v315 = vpack.c.b16 %v307, %v305
        %v356 = vunpack.c.l.b16 %v252
        %v357 = vunpack.c.h.b16 %v252
        %v358 = vunpack.c.l.b16 %v253
        %v359 = vunpack.c.h.b16 %v253
        %v360 = vunpack.c.l.b16 %v254
        %v361 = vunpack.c.h.b16 %v254
        %v362 = vunpack.c.l.b16 %v255
        %v363 = vunpack.c.h.b16 %v255
        %v364 = vunpack.c.l.b16 %v256
        %v365 = vunpack.c.h.b16 %v256
        %v366 = vunpack.c.l.b16 %v257
        %v367 = vunpack.c.h.b16 %v257
        %v368 = vunpack.c.l.b16 %v258
        %v369 = vunpack.c.h.b16 %v258
        %v370 = vunpack.c.l.b16 %v259
        %v371 = vunpack.c.h.b16 %v259
        %v372 = vunpack.c.l.b16 %v260
        %v373 = vunpack.c.h.b16 %v260
        %v374 = vunpack.c.l.b16 %v261
        %v375 = vunpack.c.h.b16 %v261
        %v376 = vunpack.c.l.b16 %v262
        %v377 = vunpack.c.h.b16 %v262
        %v378 = vunpack.c.l.b16 %v263
        %v379 = vunpack.c.h.b16 %v263
        %v380 = vunpack.c.l.b16 %v264
        %v381 = vunpack.c.h.b16 %v264
        %v382 = vunpack.c.l.b16 %v265
        %v383 = vunpack.c.h.b16 %v265
        %v384 = vunpack.c.l.b16 %v266
        %v385 = vunpack.c.h.b16 %v266
        %v386 = vunpack.c.l.b16 %v267
        %v387 = vunpack.c.h.b16 %v267
        %v388 = vunpack.c.l.b16 %v268
        %v389 = vunpack.c.h.b16 %v268
        %v390 = vunpack.c.l.b16 %v269
        %v391 = vunpack.c.h.b16 %v269
        %v392 = vunpack.c.l.b16 %v270
        %v393 = vunpack.c.h.b16 %v270
        %v394 = vunpack.c.l.b16 %v271
        %v395 = vunpack.c.h.b16 %v271
        %v396 = vunpack.c.l.b16 %v272
        %v397 = vunpack.c.h.b16 %v272
        %v398 = vunpack.c.l.b16 %v273
        %v399 = vunpack.c.h.b16 %v273
        %v400 = vunpack.c.l.b16 %v274
        %v401 = vunpack.c.h.b16 %v274
        %v402 = vunpack.c.l.b16 %v275
        %v403 = vunpack.c.h.b16 %v275
        %v404 = vunpack.c.l.b16 %v276
        %v405 = vunpack.c.h.b16 %v276
        %v406 = vunpack.c.l.b16 %v277
        %v407 = vunpack.c.h.b16 %v277
        %v408 = vunpack.c.l.b16 %v278
        %v409 = vunpack.c.h.b16 %v278
        %v410 = vunpack.c.l.b16 %v279
        %v411 = vunpack.c.h.b16 %v279
        %v412 = vunpack.c.l.b16 %v280
        %v413 = vunpack.c.h.b16 %v280
        %v414 = vunpack.c.l.b16 %v281
        %v415 = vunpack.c.h.b16 %v281
        %v416 = vunpack.c.l.b16 %v282
        %v417 = vunpack.c.h.b16 %v282
        %v418 = vunpack.c.l.b16 %v283
        %v419 = vunpack.c.h.b16 %v283
        %v420 = vpack.c.b16 %v358, %v356
        %v421 = vpack.c.b16 %v359, %v357
        %v422 = vpack.c.b16 %v362, %v360
        %v423 = vpack.c.b16 %v363, %v361
        %v424 = vpack.c.b16 %v366, %v364
        %v425 = vpack.c.b16 %v367, %v365
        %v426 = vpack.c.b16 %v370, %v368
        %v427 = vpack.c.b16 %v371, %v369
        %v428 = vpack.c.b16 %v374, %v372
        %v429 = vpack.c.b16 %v375, %v373
        %v430 = vpack.c.b16 %v378, %v376
        %v431 = vpack.c.b16 %v379, %v377
        %v432 = vpack.c.b16 %v382, %v380
        %v433 = vpack.c.b16 %v383, %v381
        %v434 = vpack.c.b16 %v386, %v384
        %v435 = vpack.c.b16 %v387, %v385
        %v436 = vpack.c.b16 %v390, %v388
        %v437 = vpack.c.b16 %v391, %v389
        %v438 = vpack.c.b16 %v394, %v392
        %v439 = vpack.c.b16 %v395, %v393
        %v440 = vpack.c.b16 %v398, %v396
        %v441 = vpack.c.b16 %v399, %v397
        %v442 = vpack.c.b16 %v402, %v400
        %v443 = vpack.c.b16 %v403, %v401
        %v444 = vpack.c.b16 %v406, %v404
        %v445 = vpack.c.b16 %v407, %v405
        %v446 = vpack.c.b16 %v410, %v408
        %v447 = vpack.c.b16 %v411, %v409
        %v448 = vpack.c.b16 %v414, %v412
        %v449 = vpack.c.b16 %v415, %v413
        %v450 = vpack.c.b16 %v418, %v416
        %v451 = vpack.c.b16 %v419, %v417
        %484 = vmatpush.bf16.msra.mxu0 %v434
        %485 = vmatpush.bf16.msra.mxu0 %v432
        %486 = vmatpush.bf16.msra.mxu0 %v430
        %487 = vmatpush.bf16.msra.mxu0 %v428
        %488 = vmatpush.bf16.msra.mxu0 %v426
        %489 = vmatpush.bf16.msra.mxu0 %v424
        %490 = vmatpush.bf16.msra.mxu0 %v422
        %491 = vmatpush.bf16.msra.mxu0 %v420
        %492 = vmatmul.bf16.gmra.mxu0 %v308
        %v493 = vpop.f32.mrf.mxu0
        %v494 = vadd.f32 0.0, %v493
        %v495 = vpop.f32.mrf.mxu0
        %v496 = vadd.f32 0.0, %v495
        %497 = vmatmul.bf16.gmra.mxu0 %v310
        %v498 = vpop.f32.mrf.mxu0
        %v499 = vadd.f32 0.0, %v498
        %v500 = vpop.f32.mrf.mxu0
        %v501 = vadd.f32 0.0, %v500
        %502 = vmatmul.bf16.gmra.mxu0 %v312
        %v503 = vpop.f32.mrf.mxu0
        %v504 = vadd.f32 0.0, %v503
        %v505 = vpop.f32.mrf.mxu0
        %v506 = vadd.f32 0.0, %v505
        %507 = vmatmul.bf16.gmra.mxu0 %v314
        %v508 = vpop.f32.mrf.mxu0
        %v509 = vadd.f32 0.0, %v508
        %v510 = vpop.f32.mrf.mxu0
        %v511 = vadd.f32 0.0, %v510
        %512 = vdwg.mxu0
        %513 = vmatpush.bf16.msra.mxu0 %v450
        %514 = vmatpush.bf16.msra.mxu0 %v448
        %515 = vmatpush.bf16.msra.mxu0 %v446
        %516 = vmatpush.bf16.msra.mxu0 %v444
        %517 = vmatpush.bf16.msra.mxu0 %v442
        %518 = vmatpush.bf16.msra.mxu0 %v440
        %519 = vmatpush.bf16.msra.mxu0 %v438
        %520 = vmatpush.bf16.msra.mxu0 %v436
        %521 = vmatmul.bf16.gmra.mxu0 %v309
        %v522 = vpop.f32.mrf.mxu0
        %v523 = vadd.f32 %v494, %v522
        %v524 = vpop.f32.mrf.mxu0
        %v525 = vadd.f32 %v496, %v524
        %526 = vmatmul.bf16.gmra.mxu0 %v311
        %v527 = vpop.f32.mrf.mxu0
        %v528 = vadd.f32 %v499, %v527
        %v529 = vpop.f32.mrf.mxu0
        %v530 = vadd.f32 %v501, %v529
        %531 = vmatmul.bf16.gmra.mxu0 %v313
        %v532 = vpop.f32.mrf.mxu0
        %v533 = vadd.f32 %v504, %v532
        %v534 = vpop.f32.mrf.mxu0
        %v535 = vadd.f32 %v506, %v534
        %536 = vmatmul.bf16.gmra.mxu0 %v315
        %v537 = vpop.f32.mrf.mxu0
        %v538 = vadd.f32 %v509, %v537
        %v539 = vpop.f32.mrf.mxu0
        %v540 = vadd.f32 %v511, %v539
        %541 = vdwg.mxu0
        %542 = vmatpush.bf16.msra.mxu0 %v435
        %543 = vmatpush.bf16.msra.mxu0 %v433
        %544 = vmatpush.bf16.msra.mxu0 %v431
        %545 = vmatpush.bf16.msra.mxu0 %v429
        %546 = vmatpush.bf16.msra.mxu0 %v427
        %547 = vmatpush.bf16.msra.mxu0 %v425
        %548 = vmatpush.bf16.msra.mxu0 %v423
        %549 = vmatpush.bf16.msra.mxu0 %v421
        %550 = vmatmul.bf16.gmra.mxu0 %v308
        %v551 = vpop.f32.mrf.mxu0
        %v552 = vadd.f32 0.0, %v551
        %v553 = vpop.f32.mrf.mxu0
        %v554 = vadd.f32 0.0, %v553
        %555 = vmatmul.bf16.gmra.mxu0 %v310
        %v556 = vpop.f32.mrf.mxu0
        %v557 = vadd.f32 0.0, %v556
        %v558 = vpop.f32.mrf.mxu0
        %v559 = vadd.f32 0.0, %v558
        %560 = vmatmul.bf16.gmra.mxu0 %v312
        %v561 = vpop.f32.mrf.mxu0
        %v562 = vadd.f32 0.0, %v561
        %v563 = vpop.f32.mrf.mxu0
        %v564 = vadd.f32 0.0, %v563
        %565 = vmatmul.bf16.gmra.mxu0 %v314
        %v566 = vpop.f32.mrf.mxu0
        %v567 = vadd.f32 0.0, %v566
        %v568 = vpop.f32.mrf.mxu0
        %v569 = vadd.f32 0.0, %v568
        %570 = vdwg.mxu0
        %571 = vmatpush.bf16.msra.mxu0 %v451
        %572 = vmatpush.bf16.msra.mxu0 %v449
        %573 = vmatpush.bf16.msra.mxu0 %v447
        %574 = vmatpush.bf16.msra.mxu0 %v445
        %575 = vmatpush.bf16.msra.mxu0 %v443
        %576 = vmatpush.bf16.msra.mxu0 %v441
        %577 = vmatpush.bf16.msra.mxu0 %v439
        %578 = vmatpush.bf16.msra.mxu0 %v437
        %579 = vmatmul.bf16.gmra.mxu0 %v309
        %v580 = vpop.f32.mrf.mxu0
        %v581 = vadd.f32 %v552, %v580
        %v582 = vpop.f32.mrf.mxu0
        %v583 = vadd.f32 %v554, %v582
        %584 = vmatmul.bf16.gmra.mxu0 %v311
        %v585 = vpop.f32.mrf.mxu0
        %v586 = vadd.f32 %v557, %v585
        %v587 = vpop.f32.mrf.mxu0
        %v588 = vadd.f32 %v559, %v587
        %589 = vmatmul.bf16.gmra.mxu0 %v313
        %v590 = vpop.f32.mrf.mxu0
        %v591 = vadd.f32 %v562, %v590
        %v592 = vpop.f32.mrf.mxu0
        %v593 = vadd.f32 %v564, %v592
        %594 = vmatmul.bf16.gmra.mxu0 %v315
        %v595 = vpop.f32.mrf.mxu0
        %v596 = vadd.f32 %v567, %v595
        %v597 = vpop.f32.mrf.mxu0
        %v598 = vadd.f32 %v569, %v597
        %599 = vdwg.mxu0
        %v600 = vpack.c.bf16 %v581, %v523
        %v601 = vpack.c.bf16 %v583, %v525
        %v602 = vpack.c.bf16 %v586, %v528
        %v603 = vpack.c.bf16 %v588, %v530
        %v604 = vpack.c.bf16 %v591, %v533
        %v605 = vpack.c.bf16 %v593, %v535
        %v606 = vpack.c.bf16 %v596, %v538
        %v607 = vpack.c.bf16 %v598, %v540
        %v608 = vld [vmem:[#allocation7] sm:$0xf]
        %v609 = vld [vmem:[#allocation7 + $0x4] sm:$0xf]
        %v612 = vunpack.c.l.b16 %v608
        %v613 = vunpack.c.l.b16 %v609
        %v614 = vpack.c.b16 %v613, %v612
        %v617 = vunpack.c.l.b16 %v600
        %v618 = vunpack.c.h.b16 %v600
        %v619 = vunpack.c.l.b16 %v601
        %v620 = vunpack.c.h.b16 %v601
        %v621 = vpack.c.b16 %v619, %v617
        %v622 = vpack.c.b16 %v620, %v618
        %vm625 = vcmask 130048
        %v627 = vsel %vm625, %v614, 0
        %629 = vmatpush.bf16.msra.mxu0 0
        %630 = vmatpush.bf16.msra.mxu0 0
        %631 = vmatpush.bf16.msra.mxu0 0
        %632 = vmatpush.bf16.msra.mxu0 0
        %633 = vmatpush.bf16.msra.mxu0 0
        %634 = vmatpush.bf16.msra.mxu0 0
        %635 = vmatpush.bf16.msra.mxu0 0
        %636 = vmatpush.bf16.msra.mxu0 %v621
        %637 = vmatmul.bf16.gmra.mxu0 %v627
        %v638 = vpop.f32.mrf.mxu0
        %v639 = vadd.f32 0.0, %v638
        %v640 = vpop.f32.mrf.mxu0
        %v641 = vadd.f32 0.0, %v640
        %642 = vdwg.mxu0
        %643 = vmatpush.bf16.msra.mxu0 0
        %644 = vmatpush.bf16.msra.mxu0 0
        %645 = vmatpush.bf16.msra.mxu0 0
        %646 = vmatpush.bf16.msra.mxu0 0
        %647 = vmatpush.bf16.msra.mxu0 0
        %648 = vmatpush.bf16.msra.mxu0 0
        %649 = vmatpush.bf16.msra.mxu0 0
        %650 = vmatpush.bf16.msra.mxu0 %v622
        %651 = vmatmul.bf16.gmra.mxu0 %v627
        %v652 = vpop.f32.mrf.mxu0
        %v653 = vadd.f32 0.0, %v652
        %v654 = vpop.f32.mrf.mxu0
        %v655 = vadd.f32 0.0, %v654
        %656 = vdwg.mxu0
        %v659 = vunpack.c.l.b16 %v602
        %v660 = vunpack.c.h.b16 %v602
        %v661 = vunpack.c.l.b16 %v603
        %v662 = vunpack.c.h.b16 %v603
        %v663 = vpack.c.b16 %v661, %v659
        %v664 = vpack.c.b16 %v662, %v660
        %667 = vmatpush.bf16.msra.mxu0 0
        %668 = vmatpush.bf16.msra.mxu0 0
        %669 = vmatpush.bf16.msra.mxu0 0
        %670 = vmatpush.bf16.msra.mxu0 0
        %671 = vmatpush.bf16.msra.mxu0 0
        %672 = vmatpush.bf16.msra.mxu0 0
        %673 = vmatpush.bf16.msra.mxu0 0
        %674 = vmatpush.bf16.msra.mxu0 %v663
        %675 = vmatmul.bf16.gmra.mxu0 %v627
        %v676 = vpop.f32.mrf.mxu0
        %v677 = vadd.f32 0.0, %v676
        %v678 = vpop.f32.mrf.mxu0
        %v679 = vadd.f32 0.0, %v678
        %680 = vdwg.mxu0
        %681 = vmatpush.bf16.msra.mxu0 0
        %682 = vmatpush.bf16.msra.mxu0 0
        %683 = vmatpush.bf16.msra.mxu0 0
        %684 = vmatpush.bf16.msra.mxu0 0
        %685 = vmatpush.bf16.msra.mxu0 0
        %686 = vmatpush.bf16.msra.mxu0 0
        %687 = vmatpush.bf16.msra.mxu0 0
        %688 = vmatpush.bf16.msra.mxu0 %v664
        %689 = vmatmul.bf16.gmra.mxu0 %v627
        %v690 = vpop.f32.mrf.mxu0
        %v691 = vadd.f32 0.0, %v690
        %v692 = vpop.f32.mrf.mxu0
        %v693 = vadd.f32 0.0, %v692
        %694 = vdwg.mxu0
        %v697 = vunpack.c.l.b16 %v604
        %v698 = vunpack.c.h.b16 %v604
        %v699 = vunpack.c.l.b16 %v605
        %v700 = vunpack.c.h.b16 %v605
        %v701 = vpack.c.b16 %v699, %v697
        %v702 = vpack.c.b16 %v700, %v698
        %705 = vmatpush.bf16.msra.mxu0 0
        %706 = vmatpush.bf16.msra.mxu0 0
        %707 = vmatpush.bf16.msra.mxu0 0
        %708 = vmatpush.bf16.msra.mxu0 0
        %709 = vmatpush.bf16.msra.mxu0 0
        %710 = vmatpush.bf16.msra.mxu0 0
        %711 = vmatpush.bf16.msra.mxu0 0
        %712 = vmatpush.bf16.msra.mxu0 %v701
        %713 = vmatmul.bf16.gmra.mxu0 %v627
        %v714 = vpop.f32.mrf.mxu0
        %v715 = vadd.f32 0.0, %v714
        %v716 = vpop.f32.mrf.mxu0
        %v717 = vadd.f32 0.0, %v716
        %718 = vdwg.mxu0
        %719 = vmatpush.bf16.msra.mxu0 0
        %720 = vmatpush.bf16.msra.mxu0 0
        %721 = vmatpush.bf16.msra.mxu0 0
        %722 = vmatpush.bf16.msra.mxu0 0
        %723 = vmatpush.bf16.msra.mxu0 0
        %724 = vmatpush.bf16.msra.mxu0 0
        %725 = vmatpush.bf16.msra.mxu0 0
        %726 = vmatpush.bf16.msra.mxu0 %v702
        %727 = vmatmul.bf16.gmra.mxu0 %v627
        %v728 = vpop.f32.mrf.mxu0
        %v729 = vadd.f32 0.0, %v728
        %v730 = vpop.f32.mrf.mxu0
        %v731 = vadd.f32 0.0, %v730
        %732 = vdwg.mxu0
        %v735 = vunpack.c.l.b16 %v606
        %v736 = vunpack.c.h.b16 %v606
        %v737 = vunpack.c.l.b16 %v607
        %v738 = vunpack.c.h.b16 %v607
        %v739 = vpack.c.b16 %v737, %v735
        %v740 = vpack.c.b16 %v738, %v736
        %743 = vmatpush.bf16.msra.mxu0 0
        %744 = vmatpush.bf16.msra.mxu0 0
        %745 = vmatpush.bf16.msra.mxu0 0
        %746 = vmatpush.bf16.msra.mxu0 0
        %747 = vmatpush.bf16.msra.mxu0 0
        %748 = vmatpush.bf16.msra.mxu0 0
        %749 = vmatpush.bf16.msra.mxu0 0
        %750 = vmatpush.bf16.msra.mxu0 %v739
        %751 = vmatmul.bf16.gmra.mxu0 %v627
        %v752 = vpop.f32.mrf.mxu0
        %v753 = vadd.f32 0.0, %v752
        %v754 = vpop.f32.mrf.mxu0
        %v755 = vadd.f32 0.0, %v754
        %756 = vdwg.mxu0
        %757 = vmatpush.bf16.msra.mxu0 0
        %758 = vmatpush.bf16.msra.mxu0 0
        %759 = vmatpush.bf16.msra.mxu0 0
        %760 = vmatpush.bf16.msra.mxu0 0
        %761 = vmatpush.bf16.msra.mxu0 0
        %762 = vmatpush.bf16.msra.mxu0 0
        %763 = vmatpush.bf16.msra.mxu0 0
        %764 = vmatpush.bf16.msra.mxu0 %v740
        %765 = vmatmul.bf16.gmra.mxu0 %v627
        %v766 = vpop.f32.mrf.mxu0
        %v767 = vadd.f32 0.0, %v766
        %v768 = vpop.f32.mrf.mxu0
        %v769 = vadd.f32 0.0, %v768
        %770 = vdwg.mxu0
        %771 = vst [vmem:[%s224] sm:$0xff] %v639
        %772 = vst [vmem:[%s224 + $0x8] sm:$0xff] %v653
        %773 = vst [vmem:[%s224 + $0x10] sm:$0xff] %v641
        %774 = vst [vmem:[%s224 + $0x18] sm:$0xff] %v655
        %775 = vst [vmem:[%s224 + $0x20] sm:$0xff] %v677
        %776 = vst [vmem:[%s224 + $0x28] sm:$0xff] %v691
        %777 = vst [vmem:[%s224 + $0x30] sm:$0xff] %v679
        %778 = vst [vmem:[%s224 + $0x38] sm:$0xff] %v693
        %779 = vst [vmem:[%s224 + $0x40] sm:$0xff] %v715
        %780 = vst [vmem:[%s224 + $0x48] sm:$0xff] %v729
        %781 = vst [vmem:[%s224 + $0x50] sm:$0xff] %v717
        %782 = vst [vmem:[%s224 + $0x58] sm:$0xff] %v731
        %783 = vst [vmem:[%s224 + $0x60] sm:$0xff] %v753
        %784 = vst [vmem:[%s224 + $0x68] sm:$0xff] %v767
        %785 = vst [vmem:[%s224 + $0x70] sm:$0xff] %v755
        %786 = vst [vmem:[%s224 + $0x78] sm:$0xff] %v769
        %s787 = sand.u32 %s97, 1
        %s788 = scalar_lea.sflag [#allocation4], %s787
        %s789 = sand.u32 %s97, 1
        %s790 = smul.addr %s789, 128
        %s791 = scalar_lea.vmem [#allocation8], %s790
        // Predicated region
        $region45: #{tpu_custom_call.1} parent=31 // pred_check
          %p792 = pneg %p107
        $region46: #{tpu_custom_call.1} parent=31 // pred_check_branch
          %794 = sbr.rel (%p792) target = $region48
        $region47: #{tpu_custom_call.1} parent=31 // pred_region
          %s795 = smul.u32 4, %s21
          %797 = vsyncadd %s788, 0
          %s798 = smul.addr %s795, 4
          %s799 = smul.addr %s798, 8
          %s800 = scalar_lea.hbm %s3, %s799
          %s801 = sshll.u32 %s791, 4
          %s802 = int_to_ptr.vmem [resolvable:$true] %s801
          %s803 = sshll.u32 %s800, 4
          %s804 = int_to_ptr.hbm [resolvable:$true] %s803
          %809 = dma.vmem_to_hbm [thread:$0]  %s802, 2048, %s804, %s788, 256, 256, 16
        $region48: #{tpu_custom_call.1} parent=31 // pred_fallthru
          _
      $region32: #{tpu_custom_call.1} parent=5 // pred_fallthru
        _
      %p810 = scmp.le.s32.totalorder 2, %s16
      // Predicated region
      $region49: #{tpu_custom_call.1} parent=5 // pred_check
        %p811 = pneg %p810
      $region50: #{tpu_custom_call.1} parent=5 // pred_check_branch
        %813 = sbr.rel (%p811) target = $region52
      $region51: #{tpu_custom_call.1} parent=5 // pred_region
        %s814 = ssub.s32 %s16, 2
        // Predicated region
        $region53: #{tpu_custom_call.1} parent=51 // pred_check
          %p815 = pneg %p113
        $region54: #{tpu_custom_call.1} parent=51 // pred_check_branch
          %817 = sbr.rel (%p815) target = $region56
        $region55: #{tpu_custom_call.1} parent=51 // pred_region
          %s818 = sand.u32 %s98, 1
          %s819 = scalar_lea.sflag [#allocation4], %s818
          %s820 = sand.u32 %s98, 1
          %s821 = smul.addr %s820, 128
          %s822 = scalar_lea.vmem [#allocation8], %s821
          %824 = dma.done %s819, 2048
        $region56: #{tpu_custom_call.1} parent=51 // pred_fallthru
          _
      $region52: #{tpu_custom_call.1} parent=5 // pred_fallthru
        _
    $region6: #{tpu_custom_call.1} parent=1 // loop_footer
      %s20 = sadd.s32 1, %s16
    $region7: #{tpu_custom_call.1} parent=1 // loop_footer_branch
      %15 = sbr.rel target = $region3
    $region8: #{tpu_custom_call.1} parent=1 // loop_exit
      _
    %825 = vsyncpa [#allocation3], 1
    %s826 = scalar_lea.sflag [#allocation3], 1
    %827 = vsyncpa %s826, 1
    %828 = vsyncpa [#allocation6], 1
    %829 = vsyncpa [#allocation4], 1
    %s830 = scalar_lea.sflag [#allocation4], 1
    %831 = vsyncpa %s830, 1

</llo_original>
